<compile_context>
chip_gen: v6e
topology: v6e:2x2x1
jax: 0.10.0
libtpu: 0.0.40
codegen_flags: <defaults>
</compile_context>

<pallas_src>
import math
import jax
import jax.numpy as jnp
from jax.experimental import pallas as pl
from jax.experimental.pallas import tpu as pltpu

# ---- model hyper-parameters ----
FEATURE_DIMENSION = 32
NUM_HEADS = 4
HEAD_DIM = FEATURE_DIMENSION // NUM_HEADS
FFN_HIDDEN = 4 * FEATURE_DIMENSION
DROPOUT_PROBABILITY = 0.1   # eval mode -> identity in forward
SEQ_LEN = 8
BATCH = 2
LN_EPS = 1e-5


def _layer_norm(x, gamma, beta):
    # x: (N, D); gamma/beta: (1, D); normalize over last dim (PyTorch semantics).
    mean = jnp.mean(x, axis=-1, keepdims=True)
    xc = x - mean
    var = jnp.mean(xc * xc, axis=-1, keepdims=True)
    return xc * jax.lax.rsqrt(var + LN_EPS) * gamma + beta


def encoder_layer_kernel(x_ref, wqkv_ref, bqkv_ref, wo_ref, w1_ref, b1_ref, w2_ref,
                         vecs_ref, o_ref):
    B, S, D = x_ref.shape
    BH = wqkv_ref.shape[0]          # B * NUM_HEADS
    H = BH // B
    HD = D // H

    x3 = x_ref[...].astype(jnp.float32)        # (B, S, D)
    x2d = x3.reshape(B * S, D)                 # fold batch into sublanes (tile-aligned)

    # ---- self-attention, batched over (batch, head); flat index = b*H + h ----
    # Activations are broadcast across heads; per-head weight slices (repeated across
    # batch) come pre-packed from the wrapper, so no lane-dim reshapes are required.
    x_bh = jnp.broadcast_to(x3[:, None, :, :], (B, H, S, D)).reshape(BH, S, D)

    qkv = jnp.einsum("bsd,bdk->bsk", x_bh, wqkv_ref[...],
                     preferred_element_type=jnp.float32) + bqkv_ref[...]   # (BH, S, 3*HD)
    q = qkv[:, :, 0 * HD:1 * HD]
    k = qkv[:, :, 1 * HD:2 * HD]
    v = qkv[:, :, 2 * HD:3 * HD]

    # TODO(synk): optional attention `mask` argument is None in this path and not applied.
    s = jnp.einsum("bqd,bkd->bqk", q, k, preferred_element_type=jnp.float32)
    s = s * (1.0 / math.sqrt(HD))
    s = s - jnp.max(s, axis=-1, keepdims=True)
    p = jnp.exp(s)
    p = p * pl.reciprocal(jnp.sum(p, axis=-1, keepdims=True), approx=True)
    ctx = jnp.einsum("bqk,bkd->bqd", p, v, preferred_element_type=jnp.float32)  # (BH, S, HD)

    # Output projection per head, then reduce over heads (just H-1 plain VPU adds;
    # all matmul work above is batched — no per-head MXU pushes or concatenates).
    attn = jnp.einsum("bsk,bkd->bsd", ctx, wo_ref[...],
                      preferred_element_type=jnp.float32)                  # (BH, S, D)
    attn4 = attn.reshape(B, H, S, D)
    attn3 = attn4[:, 0]
    for h in range(1, H):
        attn3 = attn3 + attn4[:, h]
    attn2d = attn3.reshape(B * S, D)

    vecs = vecs_ref[...]                        # (6, D): bo, b2, g1, be1, g2, be2
    bo, b2, g1, be1, g2, be2 = (vecs[i:i + 1, :] for i in range(6))

    # ---- residual + LayerNorm 1 (dropout = identity in eval mode) ----
    h1 = _layer_norm(x2d + attn2d + bo, g1, be1)

    # ---- feed-forward ----
    f = jnp.dot(h1, w1_ref[...], preferred_element_type=jnp.float32) + b1_ref[...]
    f = jnp.maximum(f, 0.0)
    f = jnp.dot(f, w2_ref[...], preferred_element_type=jnp.float32) + b2

    # ---- residual + LayerNorm 2 ----
    h2 = _layer_norm(h1 + f, g2, be2)

    o_ref[...] = h2.reshape(B, S, D).astype(o_ref.dtype)


def _pack_params(p, batch):
    """Pack 17 parameter tensors into 7 kernel operands (done in plain JAX, outside the kernel)."""
    D, H, HD = FEATURE_DIMENSION, NUM_HEADS, HEAD_DIM

    def head_cols(w):  # (D, D) -> (H, D, HD): the columns belonging to head h.
        return jnp.transpose(w.reshape(D, H, HD), (1, 0, 2))

    wqkv_h = jnp.concatenate(
        [head_cols(p["wq"]), head_cols(p["wk"]), head_cols(p["wv"])], axis=-1)   # (H, D, 3*HD)
    bqkv_h = jnp.concatenate(
        [p["bq"].reshape(H, 1, HD), p["bk"].reshape(H, 1, HD), p["bv"].reshape(H, 1, HD)],
        axis=-1)                                                                 # (H, 1, 3*HD)
    wo_h = p["wo"].reshape(H, HD, D)                                             # (H, HD, D)

    # Repeat per-head slices across batch so attention is one batched einsum over
    # a leading B*H dim (flat index = b*H + h).  Extra weight bytes are negligible.
    wqkv_bh = jnp.tile(wqkv_h, (batch, 1, 1))   # (B*H, D, 3*HD)
    bqkv_bh = jnp.tile(bqkv_h, (batch, 1, 1))   # (B*H, 1, 3*HD)
    wo_bh = jnp.tile(wo_h, (batch, 1, 1))       # (B*H, HD, D)

    vecs = jnp.concatenate(
        [p["bo"], p["b2"], p["g1"], p["be1"], p["g2"], p["be2"]], axis=0)        # (6, D)

    return [wqkv_bh, bqkv_bh, wo_bh, p["w1"], p["b1"], p["w2"], vecs]


@jax.jit
def transformer_encoder_layer(x, params):
    B, S, D = x.shape
    packed = _pack_params(params, B)
    n_in = 1 + len(packed)
    vmem = lambda: pl.BlockSpec(memory_space=pltpu.MemorySpace.VMEM)
    return pl.pallas_call(
        encoder_layer_kernel,
        out_shape=jax.ShapeDtypeStruct((B, S, D), jnp.float32),
        in_specs=[vmem() for _ in range(n_in)],
        out_specs=vmem(),
    )(x, *packed)


def init_params(key):
    D, F = FEATURE_DIMENSION, FFN_HIDDEN
    ks = jax.random.split(key, 8)

    def lin(k, fan_in, shape):
        bound = 1.0 / math.sqrt(fan_in)
        return jax.random.uniform(k, shape, jnp.float32, -bound, bound)

    return {
        "wq": lin(ks[0], D, (D, D)), "bq": jnp.zeros((1, D), jnp.float32),
        "wk": lin(ks[1], D, (D, D)), "bk": jnp.zeros((1, D), jnp.float32),
        "wv": lin(ks[2], D, (D, D)), "bv": jnp.zeros((1, D), jnp.float32),
        "wo": lin(ks[3], D, (D, D)), "bo": jnp.zeros((1, D), jnp.float32),
        "w1": lin(ks[4], D, (D, F)), "b1": jnp.zeros((1, F), jnp.float32),
        "w2": lin(ks[5], F, (F, D)), "b2": jnp.zeros((1, D), jnp.float32),
        "g1": jnp.ones((1, D), jnp.float32), "be1": jnp.zeros((1, D), jnp.float32),
        "g2": jnp.ones((1, D), jnp.float32), "be2": jnp.zeros((1, D), jnp.float32),
    }


def reference(x, p):
    # Pure-JAX reference matching PyTorch TransformerEncoderLayer (post-norm, eval mode).
    def ln(h, g, b):
        m = jnp.mean(h, -1, keepdims=True)
        v = jnp.mean((h - m) ** 2, -1, keepdims=True)
        return (h - m) * jax.lax.rsqrt(v + LN_EPS) * g + b

    q = x @ p["wq"] + p["bq"]
    k = x @ p["wk"] + p["bk"]
    v = x @ p["wv"] + p["bv"]
    B, S, D = x.shape
    qh = q.reshape(B, S, NUM_HEADS, HEAD_DIM).transpose(0, 2, 1, 3)
    kh = k.reshape(B, S, NUM_HEADS, HEAD_DIM).transpose(0, 2, 1, 3)
    vh = v.reshape(B, S, NUM_HEADS, HEAD_DIM).transpose(0, 2, 1, 3)
    s = jnp.einsum("bhqd,bhkd->bhqk", qh, kh) / math.sqrt(HEAD_DIM)
    pmat = jax.nn.softmax(s, axis=-1)
    ctx = jnp.einsum("bhqk,bhkd->bhqd", pmat, vh).transpose(0, 2, 1, 3).reshape(B, S, D)
    attn = ctx @ p["wo"] + p["bo"]
    h1 = ln(x + attn, p["g1"], p["be1"])
    f = jnp.maximum(h1 @ p["w1"] + p["b1"], 0.0) @ p["w2"] + p["b2"]
    return ln(h1 + f, p["g2"], p["be2"])


if __name__ == "__main__":
    key = jax.random.PRNGKey(0)
    kx, kp = jax.random.split(key)
    x = jax.random.normal(kx, (BATCH, SEQ_LEN, FEATURE_DIMENSION), jnp.float32)
    params = init_params(kp)

    out = jax.block_until_ready(transformer_encoder_layer(x, params))
    ref = reference(x, params)

    assert out.shape == (BATCH, SEQ_LEN, FEATURE_DIMENSION)
    # Tolerance loosened from 1e-4 because the softmax denominator now uses the
    # approximate EUP reciprocal (~1e-3 relative); real bugs would be O(1) off.
    assert jnp.allclose(out, ref, atol=5e-3, rtol=5e-3), "mismatch vs reference"
    print("KERNEL_OK")
</pallas_src>

<mosaic_0001>
module attributes {stable_mosaic.version = 11 : i64} {
  func.func @encoder_layer_kernel(%arg0: memref<2x8x32xf32, #tpu.memory_space<vmem>>, %arg1: memref<8x32x24xf32, #tpu.memory_space<vmem>>, %arg2: memref<8x1x24xf32, #tpu.memory_space<vmem>>, %arg3: memref<8x8x32xf32, #tpu.memory_space<vmem>>, %arg4: memref<32x128xf32, #tpu.memory_space<vmem>>, %arg5: memref<1x128xf32, #tpu.memory_space<vmem>>, %arg6: memref<128x32xf32, #tpu.memory_space<vmem>>, %arg7: memref<6x32xf32, #tpu.memory_space<vmem>>, %arg8: memref<2x8x32xf32, #tpu.memory_space<vmem>>) attributes {dimension_semantics = [], scalar_prefetch = 0 : i64, scratch_operands = 0 : i64, tpu.core_type = #tpu.core_type<tc>} {
    %c0 = arith.constant 0 : index
    %c0_0 = arith.constant 0 : index
    %c0_1 = arith.constant 0 : index
    %0 = vector.load %arg0[%c0, %c0_0, %c0_1] : memref<2x8x32xf32, #tpu.memory_space<vmem>>, vector<2x8x32xf32>
    %1 = vector.shape_cast %0 : vector<2x8x32xf32> to vector<16x32xf32>
    %2 = vector.shape_cast %0 : vector<2x8x32xf32> to vector<2x1x8x32xf32>
    %3 = vector.shape_cast %2 : vector<2x1x8x32xf32> to vector<2x1x8x32xf32>
    %4 = vector.broadcast %3 : vector<2x1x8x32xf32> to vector<2x4x8x32xf32>
    %5 = vector.shape_cast %4 : vector<2x4x8x32xf32> to vector<8x8x32xf32>
    %c0_2 = arith.constant 0 : index
    %c0_3 = arith.constant 0 : index
    %c0_4 = arith.constant 0 : index
    %6 = vector.load %arg1[%c0_2, %c0_3, %c0_4] : memref<8x32x24xf32, #tpu.memory_space<vmem>>, vector<8x32x24xf32>
    "tpu.trace_start"() <{level = 10 : i32, message = "bsd,bdk->bsk"}> : () -> ()
    %cst = arith.constant dense<0.000000e+00> : vector<8x8x24xf32>
    %7 = tpu.matmul %5, %6, %cst {dimension_numbers = #tpu.dot_dimension_numbers<[2], [1], [1], [2], [0, 0, 0, 1, 1, 2], [0], [0]>} : vector<8x8x32xf32>, vector<8x32x24xf32>, vector<8x8x24xf32> -> vector<8x8x24xf32>
    "tpu.trace_stop"() : () -> ()
    %c0_5 = arith.constant 0 : index
    %c0_6 = arith.constant 0 : index
    %c0_7 = arith.constant 0 : index
    %8 = vector.load %arg2[%c0_5, %c0_6, %c0_7] : memref<8x1x24xf32, #tpu.memory_space<vmem>>, vector<8x1x24xf32>
    %9 = vector.broadcast %8 : vector<8x1x24xf32> to vector<8x8x24xf32>
    %10 = arith.addf %7, %9 : vector<8x8x24xf32>
    %11 = vector.extract_strided_slice %10 {offsets = [0, 0, 0], sizes = [8, 8, 8], strides = [1, 1, 1]} : vector<8x8x24xf32> to vector<8x8x8xf32>
    %12 = vector.extract_strided_slice %10 {offsets = [0, 0, 8], sizes = [8, 8, 8], strides = [1, 1, 1]} : vector<8x8x24xf32> to vector<8x8x8xf32>
    %13 = vector.extract_strided_slice %10 {offsets = [0, 0, 16], sizes = [8, 8, 8], strides = [1, 1, 1]} : vector<8x8x24xf32> to vector<8x8x8xf32>
    "tpu.trace_start"() <{level = 10 : i32, message = "bqd,bkd->bqk"}> : () -> ()
    %cst_8 = arith.constant dense<0.000000e+00> : vector<8x8x8xf32>
    %14 = tpu.matmul %11, %12, %cst_8 {dimension_numbers = #tpu.dot_dimension_numbers<[2], [2], [1], [1], [0, 0, 0, 1, 1, 1], [0], [0]>} : vector<8x8x8xf32>, vector<8x8x8xf32>, vector<8x8x8xf32> -> vector<8x8x8xf32>
    "tpu.trace_stop"() : () -> ()
    %cst_9 = arith.constant 0.353553385 : f32
    %15 = vector.broadcast %cst_9 : f32 to vector<8x8x8xf32>
    %16 = arith.mulf %14, %15 : vector<8x8x8xf32>
    %cst_10 = arith.constant dense<0xFF800000> : vector<8x8xf32>
    %17 = vector.multi_reduction <maximumf>, %16, %cst_10 [2] : vector<8x8x8xf32> to vector<8x8xf32>
    %18 = vector.shape_cast %17 : vector<8x8xf32> to vector<8x8x1xf32>
    %19 = vector.broadcast %18 : vector<8x8x1xf32> to vector<8x8x8xf32>
    %20 = arith.subf %16, %19 : vector<8x8x8xf32>
    %21 = math.exp %20 : vector<8x8x8xf32>
    %cst_11 = arith.constant dense<0.000000e+00> : vector<8x8xf32>
    %22 = vector.multi_reduction <add>, %21, %cst_11 [2] : vector<8x8x8xf32> to vector<8x8xf32>
    %23 = vector.shape_cast %22 : vector<8x8xf32> to vector<8x8x1xf32>
    %24 = tpu.reciprocal %23 {approx = true} : vector<8x8x1xf32> -> vector<8x8x1xf32>
    %25 = vector.broadcast %24 : vector<8x8x1xf32> to vector<8x8x8xf32>
    %26 = arith.mulf %21, %25 : vector<8x8x8xf32>
    "tpu.trace_start"() <{level = 10 : i32, message = "bqk,bkd->bqd"}> : () -> ()
    %cst_12 = arith.constant dense<0.000000e+00> : vector<8x8x8xf32>
    %27 = tpu.matmul %26, %13, %cst_12 {dimension_numbers = #tpu.dot_dimension_numbers<[2], [1], [1], [2], [0, 0, 0, 1, 1, 2], [0], [0]>} : vector<8x8x8xf32>, vector<8x8x8xf32>, vector<8x8x8xf32> -> vector<8x8x8xf32>
    "tpu.trace_stop"() : () -> ()
    %c0_13 = arith.constant 0 : index
    %c0_14 = arith.constant 0 : index
    %c0_15 = arith.constant 0 : index
    %28 = vector.load %arg3[%c0_13, %c0_14, %c0_15] : memref<8x8x32xf32, #tpu.memory_space<vmem>>, vector<8x8x32xf32>
    "tpu.trace_start"() <{level = 10 : i32, message = "bsk,bkd->bsd"}> : () -> ()
    %cst_16 = arith.constant dense<0.000000e+00> : vector<8x8x32xf32>
    %29 = tpu.matmul %27, %28, %cst_16 {dimension_numbers = #tpu.dot_dimension_numbers<[2], [1], [1], [2], [0, 0, 0, 1, 1, 2], [0], [0]>} : vector<8x8x8xf32>, vector<8x8x32xf32>, vector<8x8x32xf32> -> vector<8x8x32xf32>
    "tpu.trace_stop"() : () -> ()
    %30 = vector.shape_cast %29 : vector<8x8x32xf32> to vector<2x4x8x32xf32>
    %31 = vector.extract_strided_slice %30 {offsets = [0, 0, 0, 0], sizes = [2, 1, 8, 32], strides = [1, 1, 1, 1]} : vector<2x4x8x32xf32> to vector<2x1x8x32xf32>
    %32 = vector.shape_cast %31 : vector<2x1x8x32xf32> to vector<2x8x32xf32>
    %33 = vector.extract_strided_slice %30 {offsets = [0, 1, 0, 0], sizes = [2, 1, 8, 32], strides = [1, 1, 1, 1]} : vector<2x4x8x32xf32> to vector<2x1x8x32xf32>
    %34 = vector.shape_cast %33 : vector<2x1x8x32xf32> to vector<2x8x32xf32>
    %35 = arith.addf %32, %34 : vector<2x8x32xf32>
    %36 = vector.extract_strided_slice %30 {offsets = [0, 2, 0, 0], sizes = [2, 1, 8, 32], strides = [1, 1, 1, 1]} : vector<2x4x8x32xf32> to vector<2x1x8x32xf32>
    %37 = vector.shape_cast %36 : vector<2x1x8x32xf32> to vector<2x8x32xf32>
    %38 = arith.addf %35, %37 : vector<2x8x32xf32>
    %39 = vector.extract_strided_slice %30 {offsets = [0, 3, 0, 0], sizes = [2, 1, 8, 32], strides = [1, 1, 1, 1]} : vector<2x4x8x32xf32> to vector<2x1x8x32xf32>
    %40 = vector.shape_cast %39 : vector<2x1x8x32xf32> to vector<2x8x32xf32>
    %41 = arith.addf %38, %40 : vector<2x8x32xf32>
    %42 = vector.shape_cast %41 : vector<2x8x32xf32> to vector<16x32xf32>
    %c0_17 = arith.constant 0 : index
    %c0_18 = arith.constant 0 : index
    %43 = vector.load %arg7[%c0_17, %c0_18] : memref<6x32xf32, #tpu.memory_space<vmem>>, vector<6x32xf32>
    %44 = vector.extract_strided_slice %43 {offsets = [0, 0], sizes = [1, 32], strides = [1, 1]} : vector<6x32xf32> to vector<1x32xf32>
    %45 = vector.extract_strided_slice %43 {offsets = [1, 0], sizes = [1, 32], strides = [1, 1]} : vector<6x32xf32> to vector<1x32xf32>
    %46 = vector.extract_strided_slice %43 {offsets = [2, 0], sizes = [1, 32], strides = [1, 1]} : vector<6x32xf32> to vector<1x32xf32>
    %47 = vector.extract_strided_slice %43 {offsets = [3, 0], sizes = [1, 32], strides = [1, 1]} : vector<6x32xf32> to vector<1x32xf32>
    %48 = vector.extract_strided_slice %43 {offsets = [4, 0], sizes = [1, 32], strides = [1, 1]} : vector<6x32xf32> to vector<1x32xf32>
    %49 = vector.extract_strided_slice %43 {offsets = [5, 0], sizes = [1, 32], strides = [1, 1]} : vector<6x32xf32> to vector<1x32xf32>
    %50 = arith.addf %1, %42 : vector<16x32xf32>
    %51 = vector.broadcast %44 : vector<1x32xf32> to vector<16x32xf32>
    %52 = arith.addf %50, %51 : vector<16x32xf32>
    %cst_19 = arith.constant dense<0.000000e+00> : vector<16xf32>
    %53 = vector.multi_reduction <add>, %52, %cst_19 [1] : vector<16x32xf32> to vector<16xf32>
    %54 = vector.shape_cast %53 : vector<16xf32> to vector<16x1xf32>
    %cst_20 = arith.constant 3.200000e+01 : f32
    %55 = vector.broadcast %cst_20 : f32 to vector<16x1xf32>
    %56 = arith.divf %54, %55 : vector<16x1xf32>
    %57 = vector.broadcast %56 : vector<16x1xf32> to vector<16x32xf32>
    %58 = arith.subf %52, %57 : vector<16x32xf32>
    %59 = arith.mulf %58, %58 : vector<16x32xf32>
    %cst_21 = arith.constant dense<0.000000e+00> : vector<16xf32>
    %60 = vector.multi_reduction <add>, %59, %cst_21 [1] : vector<16x32xf32> to vector<16xf32>
    %61 = vector.shape_cast %60 : vector<16xf32> to vector<16x1xf32>
    %cst_22 = arith.constant 3.200000e+01 : f32
    %62 = vector.broadcast %cst_22 : f32 to vector<16x1xf32>
    %63 = arith.divf %61, %62 : vector<16x1xf32>
    %cst_23 = arith.constant 9.99999974E-6 : f32
    %64 = vector.broadcast %cst_23 : f32 to vector<16x1xf32>
    %65 = arith.addf %63, %64 : vector<16x1xf32>
    %66 = math.rsqrt %65 : vector<16x1xf32>
    %67 = vector.broadcast %66 : vector<16x1xf32> to vector<16x32xf32>
    %68 = arith.mulf %58, %67 : vector<16x32xf32>
    %69 = vector.broadcast %46 : vector<1x32xf32> to vector<16x32xf32>
    %70 = arith.mulf %68, %69 : vector<16x32xf32>
    %71 = vector.broadcast %47 : vector<1x32xf32> to vector<16x32xf32>
    %72 = arith.addf %70, %71 : vector<16x32xf32>
    %c0_24 = arith.constant 0 : index
    %c0_25 = arith.constant 0 : index
    %73 = vector.load %arg4[%c0_24, %c0_25] : memref<32x128xf32, #tpu.memory_space<vmem>>, vector<32x128xf32>
    %cst_26 = arith.constant dense<0.000000e+00> : vector<16x128xf32>
    %74 = tpu.matmul %72, %73, %cst_26 {dimension_numbers = #tpu.dot_dimension_numbers<[1], [0], [0], [1], [0, 0, 1, 1], [], []>} : vector<16x32xf32>, vector<32x128xf32>, vector<16x128xf32> -> vector<16x128xf32>
    %c0_27 = arith.constant 0 : index
    %c0_28 = arith.constant 0 : index
    %75 = vector.load %arg5[%c0_27, %c0_28] : memref<1x128xf32, #tpu.memory_space<vmem>>, vector<1x128xf32>
    %76 = vector.broadcast %75 : vector<1x128xf32> to vector<16x128xf32>
    %77 = arith.addf %74, %76 : vector<16x128xf32>
    %cst_29 = arith.constant 0.000000e+00 : f32
    %78 = vector.broadcast %cst_29 : f32 to vector<16x128xf32>
    %79 = arith.maximumf %77, %78 : vector<16x128xf32>
    %c0_30 = arith.constant 0 : index
    %c0_31 = arith.constant 0 : index
    %80 = vector.load %arg6[%c0_30, %c0_31] : memref<128x32xf32, #tpu.memory_space<vmem>>, vector<128x32xf32>
    %cst_32 = arith.constant dense<0.000000e+00> : vector<16x32xf32>
    %81 = tpu.matmul %79, %80, %cst_32 {dimension_numbers = #tpu.dot_dimension_numbers<[1], [0], [0], [1], [0, 0, 1, 1], [], []>} : vector<16x128xf32>, vector<128x32xf32>, vector<16x32xf32> -> vector<16x32xf32>
    %82 = vector.broadcast %45 : vector<1x32xf32> to vector<16x32xf32>
    %83 = arith.addf %81, %82 : vector<16x32xf32>
    %84 = arith.addf %72, %83 : vector<16x32xf32>
    %cst_33 = arith.constant dense<0.000000e+00> : vector<16xf32>
    %85 = vector.multi_reduction <add>, %84, %cst_33 [1] : vector<16x32xf32> to vector<16xf32>
    %86 = vector.shape_cast %85 : vector<16xf32> to vector<16x1xf32>
    %cst_34 = arith.constant 3.200000e+01 : f32
    %87 = vector.broadcast %cst_34 : f32 to vector<16x1xf32>
    %88 = arith.divf %86, %87 : vector<16x1xf32>
    %89 = vector.broadcast %88 : vector<16x1xf32> to vector<16x32xf32>
    %90 = arith.subf %84, %89 : vector<16x32xf32>
    %91 = arith.mulf %90, %90 : vector<16x32xf32>
    %cst_35 = arith.constant dense<0.000000e+00> : vector<16xf32>
    %92 = vector.multi_reduction <add>, %91, %cst_35 [1] : vector<16x32xf32> to vector<16xf32>
    %93 = vector.shape_cast %92 : vector<16xf32> to vector<16x1xf32>
    %cst_36 = arith.constant 3.200000e+01 : f32
    %94 = vector.broadcast %cst_36 : f32 to vector<16x1xf32>
    %95 = arith.divf %93, %94 : vector<16x1xf32>
    %cst_37 = arith.constant 9.99999974E-6 : f32
    %96 = vector.broadcast %cst_37 : f32 to vector<16x1xf32>
    %97 = arith.addf %95, %96 : vector<16x1xf32>
    %98 = math.rsqrt %97 : vector<16x1xf32>
    %99 = vector.broadcast %98 : vector<16x1xf32> to vector<16x32xf32>
    %100 = arith.mulf %90, %99 : vector<16x32xf32>
    %101 = vector.broadcast %48 : vector<1x32xf32> to vector<16x32xf32>
    %102 = arith.mulf %100, %101 : vector<16x32xf32>
    %103 = vector.broadcast %49 : vector<1x32xf32> to vector<16x32xf32>
    %104 = arith.addf %102, %103 : vector<16x32xf32>
    %105 = vector.shape_cast %104 : vector<16x32xf32> to vector<2x8x32xf32>
    %c0_38 = arith.constant 0 : index
    %c0_39 = arith.constant 0 : index
    %c0_40 = arith.constant 0 : index
    %106 = vector.load %arg8[%c0_38, %c0_39, %c0_40] : memref<2x8x32xf32, #tpu.memory_space<vmem>>, vector<2x8x32xf32>
    tpu.vector_store %arg8[%c0_38, %c0_39, %c0_40], %105 {strides = array<i32>} : memref<2x8x32xf32, #tpu.memory_space<vmem>>, vector<2x8x32xf32>,
    return
  }
}

</mosaic_0001>

<llo_original>
// kernel: transformer_encoder_layer.1
$region0: #{transformer_encoder_layer.1}
  #allocation0 [shape = 'u32[]', space=smem, size = 0x4, offset = 0x4, fixed_abs, tag = 'smem constant byte address 0x4 - core index']
  #allocation1 [shape = 'u32[144,128]{1,0:T(1,128)}', space=vmem, size = 0x12000, scoped, tag = 'internal scratch']
  %s0 = inlined_call_operand.vmem [shape: f32[2,8,32], index: 0, kind: input, shape index: {}]
  %s1 = inlined_call_operand.vmem [shape: f32[8,32,24], index: 1, kind: input, shape index: {}]
  %s2 = inlined_call_operand.vmem [shape: f32[8,1,24], index: 2, kind: input, shape index: {}]
  %s3 = inlined_call_operand.vmem [shape: f32[8,8,32], index: 3, kind: input, shape index: {}]
  %s4 = inlined_call_operand.vmem [shape: f32[32,128], index: 4, kind: input, shape index: {}]
  %s5 = inlined_call_operand.vmem [shape: f32[1,128], index: 5, kind: input, shape index: {}]
  %s6 = inlined_call_operand.vmem [shape: f32[128,32], index: 6, kind: input, shape index: {}]
  %s7 = inlined_call_operand.vmem [shape: f32[6,32], index: 7, kind: input, shape index: {}]
  %s8 = inlined_call_operand.hbm [shape: f32[2,8,32], index: 8, kind: output, shape index: {}]
  %s9 = sld [smem:[#allocation0]]
  $region42: #{transformer_encoder_layer.1} parent=0
    _
  %s11 = ssub.s32 1, %s9
  %s12 = scalar_select 0, %s11, %s9
  $region1: #{transformer_encoder_layer.1} parent=0
    #allocation2 [shape = 'u8[8192]{0}', space=vmem, size = 0x2000, scoped, tag = 'output window, operand 0, single buffered']
    #allocation3 [shape = 's32[1]{0}', space=sflag, size = 0x4, scoped, tag = 'scoped memory for transformer_encoder_layer.1']
    %13 = vsyncpa [#allocation3], 0
    // Predicated region
    $region2: #{transformer_encoder_layer.1} parent=1 // pred_check
      _
    $region3: #{transformer_encoder_layer.1} parent=1 // pred_check_branch
      %15 = sbr.rel (0) target = $region5
    $region4: #{transformer_encoder_layer.1} parent=1 // pred_region
      _
    $region5: #{transformer_encoder_layer.1} parent=1 // pred_fallthru
      _
    // Predicated region
    $region6: #{transformer_encoder_layer.1} parent=1 // pred_check
      _
    $region7: #{transformer_encoder_layer.1} parent=1 // pred_check_branch
      %17 = sbr.rel (0) target = $region9
    $region8: #{transformer_encoder_layer.1} parent=1 // pred_region
      _
    $region9: #{transformer_encoder_layer.1} parent=1 // pred_fallthru
      _
    // Predicated region
    $region10: #{transformer_encoder_layer.1} parent=1 // pred_check
      _
    $region11: #{transformer_encoder_layer.1} parent=1 // pred_check_branch
      %19 = sbr.rel (0) target = $region13
    $region12: #{transformer_encoder_layer.1} parent=1 // pred_region
      _
    $region13: #{transformer_encoder_layer.1} parent=1 // pred_fallthru
      _
    // Predicated region
    $region14: #{transformer_encoder_layer.1} parent=1 // pred_check
      _
    $region15: #{transformer_encoder_layer.1} parent=1 // pred_check_branch
      %21 = sbr.rel (0) target = $region17
    $region16: #{transformer_encoder_layer.1} parent=1 // pred_region
      _
    $region17: #{transformer_encoder_layer.1} parent=1 // pred_fallthru
      _
    // Predicated region
    $region18: #{transformer_encoder_layer.1} parent=1 // pred_check
      _
    $region19: #{transformer_encoder_layer.1} parent=1 // pred_check_branch
      %23 = sbr.rel (0) target = $region21
    $region20: #{transformer_encoder_layer.1} parent=1 // pred_region
      _
    $region21: #{transformer_encoder_layer.1} parent=1 // pred_fallthru
      _
    // Predicated region
    $region22: #{transformer_encoder_layer.1} parent=1 // pred_check
      _
    $region23: #{transformer_encoder_layer.1} parent=1 // pred_check_branch
      %25 = sbr.rel (0) target = $region25
    $region24: #{transformer_encoder_layer.1} parent=1 // pred_region
      _
    $region25: #{transformer_encoder_layer.1} parent=1 // pred_fallthru
      _
    // Predicated region
    $region26: #{transformer_encoder_layer.1} parent=1 // pred_check
      _
    $region27: #{transformer_encoder_layer.1} parent=1 // pred_check_branch
      %27 = sbr.rel (0) target = $region29
    $region28: #{transformer_encoder_layer.1} parent=1 // pred_region
      _
    $region29: #{transformer_encoder_layer.1} parent=1 // pred_fallthru
      _
    // Predicated region
    $region30: #{transformer_encoder_layer.1} parent=1 // pred_check
      _
    $region31: #{transformer_encoder_layer.1} parent=1 // pred_check_branch
      %29 = sbr.rel (0) target = $region33
    $region32: #{transformer_encoder_layer.1} parent=1 // pred_region
      _
    $region33: #{transformer_encoder_layer.1} parent=1 // pred_fallthru
      _
    %v30 = vld [vmem:[%s0] sm:$0xff]
    %v31 = vld [vmem:[%s0 + $0x8] sm:$0xff]
    %v32 = vld [vmem:[%s1] sm:$0xff]
    %v33 = vld [vmem:[%s1 + $0x8] sm:$0xff]
    %v34 = vld [vmem:[%s1 + $0x10] sm:$0xff]
    %v35 = vld [vmem:[%s1 + $0x18] sm:$0xff]
    %v36 = vld [vmem:[%s1 + $0x20] sm:$0xff]
    %v37 = vld [vmem:[%s1 + $0x28] sm:$0xff]
    %v38 = vld [vmem:[%s1 + $0x30] sm:$0xff]
    %v39 = vld [vmem:[%s1 + $0x38] sm:$0xff]
    %v40 = vld [vmem:[%s1 + $0x40] sm:$0xff]
    %v41 = vld [vmem:[%s1 + $0x48] sm:$0xff]
    %v42 = vld [vmem:[%s1 + $0x50] sm:$0xff]
    %v43 = vld [vmem:[%s1 + $0x58] sm:$0xff]
    %v44 = vld [vmem:[%s1 + $0x60] sm:$0xff]
    %v45 = vld [vmem:[%s1 + $0x68] sm:$0xff]
    %v46 = vld [vmem:[%s1 + $0x70] sm:$0xff]
    %v47 = vld [vmem:[%s1 + $0x78] sm:$0xff]
    %v48 = vld [vmem:[%s1 + $0x80] sm:$0xff]
    %v49 = vld [vmem:[%s1 + $0x88] sm:$0xff]
    %v50 = vld [vmem:[%s1 + $0x90] sm:$0xff]
    %v51 = vld [vmem:[%s1 + $0x98] sm:$0xff]
    %v52 = vld [vmem:[%s1 + $0xa0] sm:$0xff]
    %v53 = vld [vmem:[%s1 + $0xa8] sm:$0xff]
    %v54 = vld [vmem:[%s1 + $0xb0] sm:$0xff]
    %v55 = vld [vmem:[%s1 + $0xb8] sm:$0xff]
    %v56 = vld [vmem:[%s1 + $0xc0] sm:$0xff]
    %v57 = vld [vmem:[%s1 + $0xc8] sm:$0xff]
    %v58 = vld [vmem:[%s1 + $0xd0] sm:$0xff]
    %v59 = vld [vmem:[%s1 + $0xd8] sm:$0xff]
    %v60 = vld [vmem:[%s1 + $0xe0] sm:$0xff]
    %v61 = vld [vmem:[%s1 + $0xe8] sm:$0xff]
    %v62 = vld [vmem:[%s1 + $0xf0] sm:$0xff]
    %v63 = vld [vmem:[%s1 + $0xf8] sm:$0xff]
    %v64 = vld [vmem:[%s2] sm:$0x1]
    %v65 = vld [vmem:[%s2 + $0x1] sm:$0x1]
    %v66 = vld [vmem:[%s2 + $0x2] sm:$0x1]
    %v67 = vld [vmem:[%s2 + $0x3] sm:$0x1]
    %v68 = vld [vmem:[%s2 + $0x4] sm:$0x1]
    %v69 = vld [vmem:[%s2 + $0x5] sm:$0x1]
    %v70 = vld [vmem:[%s2 + $0x6] sm:$0x1]
    %v71 = vld [vmem:[%s2 + $0x7] sm:$0x1]
    %v80 = vlaneseq
    %v81 = vshrl.u32 %v80, 7
    %v82 = vsub.s32 0, %v81
    %v83 = vrot.slane %v64, %v82
    %v84 = vlaneseq
    %v85 = vshrl.u32 %v84, 7
    %v86 = vsub.s32 0, %v85
    %v87 = vrot.slane %v65, %v86
    %v88 = vlaneseq
    %v89 = vshrl.u32 %v88, 7
    %v90 = vsub.s32 0, %v89
    %v91 = vrot.slane %v66, %v90
    %v92 = vlaneseq
    %v93 = vshrl.u32 %v92, 7
    %v94 = vsub.s32 0, %v93
    %v95 = vrot.slane %v67, %v94
    %v96 = vlaneseq
    %v97 = vshrl.u32 %v96, 7
    %v98 = vsub.s32 0, %v97
    %v99 = vrot.slane %v68, %v98
    %v100 = vlaneseq
    %v101 = vshrl.u32 %v100, 7
    %v102 = vsub.s32 0, %v101
    %v103 = vrot.slane %v69, %v102
    %v104 = vlaneseq
    %v105 = vshrl.u32 %v104, 7
    %v106 = vsub.s32 0, %v105
    %v107 = vrot.slane %v70, %v106
    %v108 = vlaneseq
    %v109 = vshrl.u32 %v108, 7
    %v110 = vsub.s32 0, %v109
    %v111 = vrot.slane %v71, %v110
    %vm120 = vcmask 261120
    %v122 = vsel %vm120, %v30, 0
    %124 = vmatprep.subr.mxu0 0.0
    %125 = vmatpush1.msra.mxu0 0.0
    %126 = vmatprep.subr.mxu0 0.0
    %127 = vmatpush1.msra.mxu0 0.0
    %128 = vmatprep.subr.mxu0 0.0
    %129 = vmatpush1.msra.mxu0 0.0
    %130 = vmatprep.subr.mxu0 0.0
    %131 = vmatpush1.msra.mxu0 0.0
    %132 = vmatprep.subr.mxu0 0.0
    %133 = vmatpush1.msra.mxu0 0.0
    %134 = vmatprep.subr.mxu0 0.0
    %135 = vmatpush1.msra.mxu0 0.0
    %136 = vmatprep.subr.mxu0 0.0
    %137 = vmatpush1.msra.mxu0 0.0
    %138 = vmatprep.subr.mxu0 0.0
    %139 = vmatpush1.msra.mxu0 0.0
    %140 = vmatprep.subr.mxu0 0.0
    %141 = vmatpush1.msra.mxu0 0.0
    %142 = vmatprep.subr.mxu0 0.0
    %143 = vmatpush1.msra.mxu0 0.0
    %144 = vmatprep.subr.mxu0 0.0
    %145 = vmatpush1.msra.mxu0 0.0
    %146 = vmatprep.subr.mxu0 0.0
    %147 = vmatpush1.msra.mxu0 0.0
    %148 = vmatprep.subr.mxu0 0.0
    %149 = vmatpush1.msra.mxu0 %v35
    %150 = vmatprep.subr.mxu0 0.0
    %151 = vmatpush1.msra.mxu0 %v34
    %152 = vmatprep.subr.mxu0 0.0
    %153 = vmatpush1.msra.mxu0 %v33
    %154 = vmatprep.subr.mxu0 0.0
    %155 = vmatpush1.msra.mxu0 %v32
    %156 = vmatprep.subr.mxu0 0.0
    %157 = vmatpush2.msra.mxu0 0.0
    %158 = vmatprep.subr.mxu0 0.0
    %159 = vmatpush2.msra.mxu0 0.0
    %160 = vmatprep.subr.mxu0 0.0
    %161 = vmatpush2.msra.mxu0 0.0
    %162 = vmatprep.subr.mxu0 0.0
    %163 = vmatpush2.msra.mxu0 0.0
    %164 = vmatprep.subr.mxu0 0.0
    %165 = vmatpush2.msra.mxu0 0.0
    %166 = vmatprep.subr.mxu0 0.0
    %167 = vmatpush2.msra.mxu0 0.0
    %168 = vmatprep.subr.mxu0 0.0
    %169 = vmatpush2.msra.mxu0 0.0
    %170 = vmatprep.subr.mxu0 0.0
    %171 = vmatpush2.msra.mxu0 0.0
    %172 = vmatprep.subr.mxu0 0.0
    %173 = vmatpush2.msra.mxu0 0.0
    %174 = vmatprep.subr.mxu0 0.0
    %175 = vmatpush2.msra.mxu0 0.0
    %176 = vmatprep.subr.mxu0 0.0
    %177 = vmatpush2.msra.mxu0 0.0
    %178 = vmatprep.subr.mxu0 0.0
    %179 = vmatpush2.msra.mxu0 0.0
    %180 = vmatprep.subr.mxu0 0.0
    %181 = vmatpush2.msra.mxu0 0.0
    %182 = vmatprep.subr.mxu0 0.0
    %183 = vmatpush2.msra.mxu0 0.0
    %184 = vmatprep.subr.mxu0 0.0
    %185 = vmatpush2.msra.mxu0 0.0
    %186 = vmatprep.subr.mxu0 0.0
    %187 = vmatpush2.msra.mxu0 0.0
    %188 = vmatprep.mubr.f32.mxu0 0.0
    %189 = vmatmul.mubr.f32.gmra.mxu0 %v122
    %v190 = vpop.f32.mrf.mxu0
    %v191 = vadd.f32 %v83, %v190
    %v192 = vpop.f32.mrf.mxu0
    %193 = vdwg.mxu0
    %194 = vmatprep.subr.mxu0 0.0
    %195 = vmatpush1.msra.mxu0 0.0
    %196 = vmatprep.subr.mxu0 0.0
    %197 = vmatpush1.msra.mxu0 0.0
    %198 = vmatprep.subr.mxu0 0.0
    %199 = vmatpush1.msra.mxu0 0.0
    %200 = vmatprep.subr.mxu0 0.0
    %201 = vmatpush1.msra.mxu0 0.0
    %202 = vmatprep.subr.mxu0 0.0
    %203 = vmatpush1.msra.mxu0 0.0
    %204 = vmatprep.subr.mxu0 0.0
    %205 = vmatpush1.msra.mxu0 0.0
    %206 = vmatprep.subr.mxu0 0.0
    %207 = vmatpush1.msra.mxu0 0.0
    %208 = vmatprep.subr.mxu0 0.0
    %209 = vmatpush1.msra.mxu0 0.0
    %210 = vmatprep.subr.mxu0 0.0
    %211 = vmatpush1.msra.mxu0 0.0
    %212 = vmatprep.subr.mxu0 0.0
    %213 = vmatpush1.msra.mxu0 0.0
    %214 = vmatprep.subr.mxu0 0.0
    %215 = vmatpush1.msra.mxu0 0.0
    %216 = vmatprep.subr.mxu0 0.0
    %217 = vmatpush1.msra.mxu0 0.0
    %218 = vmatprep.subr.mxu0 0.0
    %219 = vmatpush1.msra.mxu0 %v39
    %220 = vmatprep.subr.mxu0 0.0
    %221 = vmatpush1.msra.mxu0 %v38
    %222 = vmatprep.subr.mxu0 0.0
    %223 = vmatpush1.msra.mxu0 %v37
    %224 = vmatprep.subr.mxu0 0.0
    %225 = vmatpush1.msra.mxu0 %v36
    %226 = vmatprep.subr.mxu0 0.0
    %227 = vmatpush2.msra.mxu0 0.0
    %228 = vmatprep.subr.mxu0 0.0
    %229 = vmatpush2.msra.mxu0 0.0
    %230 = vmatprep.subr.mxu0 0.0
    %231 = vmatpush2.msra.mxu0 0.0
    %232 = vmatprep.subr.mxu0 0.0
    %233 = vmatpush2.msra.mxu0 0.0
    %234 = vmatprep.subr.mxu0 0.0
    %235 = vmatpush2.msra.mxu0 0.0
    %236 = vmatprep.subr.mxu0 0.0
    %237 = vmatpush2.msra.mxu0 0.0
    %238 = vmatprep.subr.mxu0 0.0
    %239 = vmatpush2.msra.mxu0 0.0
    %240 = vmatprep.subr.mxu0 0.0
    %241 = vmatpush2.msra.mxu0 0.0
    %242 = vmatprep.subr.mxu0 0.0
    %243 = vmatpush2.msra.mxu0 0.0
    %244 = vmatprep.subr.mxu0 0.0
    %245 = vmatpush2.msra.mxu0 0.0
    %246 = vmatprep.subr.mxu0 0.0
    %247 = vmatpush2.msra.mxu0 0.0
    %248 = vmatprep.subr.mxu0 0.0
    %249 = vmatpush2.msra.mxu0 0.0
    %250 = vmatprep.subr.mxu0 0.0
    %251 = vmatpush2.msra.mxu0 0.0
    %252 = vmatprep.subr.mxu0 0.0
    %253 = vmatpush2.msra.mxu0 0.0
    %254 = vmatprep.subr.mxu0 0.0
    %255 = vmatpush2.msra.mxu0 0.0
    %256 = vmatprep.subr.mxu0 0.0
    %257 = vmatpush2.msra.mxu0 0.0
    %258 = vmatprep.mubr.f32.mxu0 0.0
    %259 = vmatmul.mubr.f32.gmra.mxu0 %v122
    %v260 = vpop.f32.mrf.mxu0
    %v261 = vadd.f32 %v87, %v260
    %v262 = vpop.f32.mrf.mxu0
    %263 = vdwg.mxu0
    %264 = vmatprep.subr.mxu0 0.0
    %265 = vmatpush1.msra.mxu0 0.0
    %266 = vmatprep.subr.mxu0 0.0
    %267 = vmatpush1.msra.mxu0 0.0
    %268 = vmatprep.subr.mxu0 0.0
    %269 = vmatpush1.msra.mxu0 0.0
    %270 = vmatprep.subr.mxu0 0.0
    %271 = vmatpush1.msra.mxu0 0.0
    %272 = vmatprep.subr.mxu0 0.0
    %273 = vmatpush1.msra.mxu0 0.0
    %274 = vmatprep.subr.mxu0 0.0
    %275 = vmatpush1.msra.mxu0 0.0
    %276 = vmatprep.subr.mxu0 0.0
    %277 = vmatpush1.msra.mxu0 0.0
    %278 = vmatprep.subr.mxu0 0.0
    %279 = vmatpush1.msra.mxu0 0.0
    %280 = vmatprep.subr.mxu0 0.0
    %281 = vmatpush1.msra.mxu0 0.0
    %282 = vmatprep.subr.mxu0 0.0
    %283 = vmatpush1.msra.mxu0 0.0
    %284 = vmatprep.subr.mxu0 0.0
    %285 = vmatpush1.msra.mxu0 0.0
    %286 = vmatprep.subr.mxu0 0.0
    %287 = vmatpush1.msra.mxu0 0.0
    %288 = vmatprep.subr.mxu0 0.0
    %289 = vmatpush1.msra.mxu0 %v43
    %290 = vmatprep.subr.mxu0 0.0
    %291 = vmatpush1.msra.mxu0 %v42
    %292 = vmatprep.subr.mxu0 0.0
    %293 = vmatpush1.msra.mxu0 %v41
    %294 = vmatprep.subr.mxu0 0.0
    %295 = vmatpush1.msra.mxu0 %v40
    %296 = vmatprep.subr.mxu0 0.0
    %297 = vmatpush2.msra.mxu0 0.0
    %298 = vmatprep.subr.mxu0 0.0
    %299 = vmatpush2.msra.mxu0 0.0
    %300 = vmatprep.subr.mxu0 0.0
    %301 = vmatpush2.msra.mxu0 0.0
    %302 = vmatprep.subr.mxu0 0.0
    %303 = vmatpush2.msra.mxu0 0.0
    %304 = vmatprep.subr.mxu0 0.0
    %305 = vmatpush2.msra.mxu0 0.0
    %306 = vmatprep.subr.mxu0 0.0
    %307 = vmatpush2.msra.mxu0 0.0
    %308 = vmatprep.subr.mxu0 0.0
    %309 = vmatpush2.msra.mxu0 0.0
    %310 = vmatprep.subr.mxu0 0.0
    %311 = vmatpush2.msra.mxu0 0.0
    %312 = vmatprep.subr.mxu0 0.0
    %313 = vmatpush2.msra.mxu0 0.0
    %314 = vmatprep.subr.mxu0 0.0
    %315 = vmatpush2.msra.mxu0 0.0
    %316 = vmatprep.subr.mxu0 0.0
    %317 = vmatpush2.msra.mxu0 0.0
    %318 = vmatprep.subr.mxu0 0.0
    %319 = vmatpush2.msra.mxu0 0.0
    %320 = vmatprep.subr.mxu0 0.0
    %321 = vmatpush2.msra.mxu0 0.0
    %322 = vmatprep.subr.mxu0 0.0
    %323 = vmatpush2.msra.mxu0 0.0
    %324 = vmatprep.subr.mxu0 0.0
    %325 = vmatpush2.msra.mxu0 0.0
    %326 = vmatprep.subr.mxu0 0.0
    %327 = vmatpush2.msra.mxu0 0.0
    %328 = vmatprep.mubr.f32.mxu0 0.0
    %329 = vmatmul.mubr.f32.gmra.mxu0 %v122
    %v330 = vpop.f32.mrf.mxu0
    %v331 = vadd.f32 %v91, %v330
    %v332 = vpop.f32.mrf.mxu0
    %333 = vdwg.mxu0
    %334 = vmatprep.subr.mxu0 0.0
    %335 = vmatpush1.msra.mxu0 0.0
    %336 = vmatprep.subr.mxu0 0.0
    %337 = vmatpush1.msra.mxu0 0.0
    %338 = vmatprep.subr.mxu0 0.0
    %339 = vmatpush1.msra.mxu0 0.0
    %340 = vmatprep.subr.mxu0 0.0
    %341 = vmatpush1.msra.mxu0 0.0
    %342 = vmatprep.subr.mxu0 0.0
    %343 = vmatpush1.msra.mxu0 0.0
    %344 = vmatprep.subr.mxu0 0.0
    %345 = vmatpush1.msra.mxu0 0.0
    %346 = vmatprep.subr.mxu0 0.0
    %347 = vmatpush1.msra.mxu0 0.0
    %348 = vmatprep.subr.mxu0 0.0
    %349 = vmatpush1.msra.mxu0 0.0
    %350 = vmatprep.subr.mxu0 0.0
    %351 = vmatpush1.msra.mxu0 0.0
    %352 = vmatprep.subr.mxu0 0.0
    %353 = vmatpush1.msra.mxu0 0.0
    %354 = vmatprep.subr.mxu0 0.0
    %355 = vmatpush1.msra.mxu0 0.0
    %356 = vmatprep.subr.mxu0 0.0
    %357 = vmatpush1.msra.mxu0 0.0
    %358 = vmatprep.subr.mxu0 0.0
    %359 = vmatpush1.msra.mxu0 %v47
    %360 = vmatprep.subr.mxu0 0.0
    %361 = vmatpush1.msra.mxu0 %v46
    %362 = vmatprep.subr.mxu0 0.0
    %363 = vmatpush1.msra.mxu0 %v45
    %364 = vmatprep.subr.mxu0 0.0
    %365 = vmatpush1.msra.mxu0 %v44
    %366 = vmatprep.subr.mxu0 0.0
    %367 = vmatpush2.msra.mxu0 0.0
    %368 = vmatprep.subr.mxu0 0.0
    %369 = vmatpush2.msra.mxu0 0.0
    %370 = vmatprep.subr.mxu0 0.0
    %371 = vmatpush2.msra.mxu0 0.0
    %372 = vmatprep.subr.mxu0 0.0
    %373 = vmatpush2.msra.mxu0 0.0
    %374 = vmatprep.subr.mxu0 0.0
    %375 = vmatpush2.msra.mxu0 0.0
    %376 = vmatprep.subr.mxu0 0.0
    %377 = vmatpush2.msra.mxu0 0.0
    %378 = vmatprep.subr.mxu0 0.0
    %379 = vmatpush2.msra.mxu0 0.0
    %380 = vmatprep.subr.mxu0 0.0
    %381 = vmatpush2.msra.mxu0 0.0
    %382 = vmatprep.subr.mxu0 0.0
    %383 = vmatpush2.msra.mxu0 0.0
    %384 = vmatprep.subr.mxu0 0.0
    %385 = vmatpush2.msra.mxu0 0.0
    %386 = vmatprep.subr.mxu0 0.0
    %387 = vmatpush2.msra.mxu0 0.0
    %388 = vmatprep.subr.mxu0 0.0
    %389 = vmatpush2.msra.mxu0 0.0
    %390 = vmatprep.subr.mxu0 0.0
    %391 = vmatpush2.msra.mxu0 0.0
    %392 = vmatprep.subr.mxu0 0.0
    %393 = vmatpush2.msra.mxu0 0.0
    %394 = vmatprep.subr.mxu0 0.0
    %395 = vmatpush2.msra.mxu0 0.0
    %396 = vmatprep.subr.mxu0 0.0
    %397 = vmatpush2.msra.mxu0 0.0
    %398 = vmatprep.mubr.f32.mxu0 0.0
    %399 = vmatmul.mubr.f32.gmra.mxu0 %v122
    %v400 = vpop.f32.mrf.mxu0
    %v401 = vadd.f32 %v95, %v400
    %v402 = vpop.f32.mrf.mxu0
    %403 = vdwg.mxu0
    %v405 = vsel %vm120, %v31, 0
    %407 = vmatprep.subr.mxu0 0.0
    %408 = vmatpush1.msra.mxu0 0.0
    %409 = vmatprep.subr.mxu0 0.0
    %410 = vmatpush1.msra.mxu0 0.0
    %411 = vmatprep.subr.mxu0 0.0
    %412 = vmatpush1.msra.mxu0 0.0
    %413 = vmatprep.subr.mxu0 0.0
    %414 = vmatpush1.msra.mxu0 0.0
    %415 = vmatprep.subr.mxu0 0.0
    %416 = vmatpush1.msra.mxu0 0.0
    %417 = vmatprep.subr.mxu0 0.0
    %418 = vmatpush1.msra.mxu0 0.0
    %419 = vmatprep.subr.mxu0 0.0
    %420 = vmatpush1.msra.mxu0 0.0
    %421 = vmatprep.subr.mxu0 0.0
    %422 = vmatpush1.msra.mxu0 0.0
    %423 = vmatprep.subr.mxu0 0.0
    %424 = vmatpush1.msra.mxu0 0.0
    %425 = vmatprep.subr.mxu0 0.0
    %426 = vmatpush1.msra.mxu0 0.0
    %427 = vmatprep.subr.mxu0 0.0
    %428 = vmatpush1.msra.mxu0 0.0
    %429 = vmatprep.subr.mxu0 0.0
    %430 = vmatpush1.msra.mxu0 0.0
    %431 = vmatprep.subr.mxu0 0.0
    %432 = vmatpush1.msra.mxu0 %v51
    %433 = vmatprep.subr.mxu0 0.0
    %434 = vmatpush1.msra.mxu0 %v50
    %435 = vmatprep.subr.mxu0 0.0
    %436 = vmatpush1.msra.mxu0 %v49
    %437 = vmatprep.subr.mxu0 0.0
    %438 = vmatpush1.msra.mxu0 %v48
    %439 = vmatprep.subr.mxu0 0.0
    %440 = vmatpush2.msra.mxu0 0.0
    %441 = vmatprep.subr.mxu0 0.0
    %442 = vmatpush2.msra.mxu0 0.0
    %443 = vmatprep.subr.mxu0 0.0
    %444 = vmatpush2.msra.mxu0 0.0
    %445 = vmatprep.subr.mxu0 0.0
    %446 = vmatpush2.msra.mxu0 0.0
    %447 = vmatprep.subr.mxu0 0.0
    %448 = vmatpush2.msra.mxu0 0.0
    %449 = vmatprep.subr.mxu0 0.0
    %450 = vmatpush2.msra.mxu0 0.0
    %451 = vmatprep.subr.mxu0 0.0
    %452 = vmatpush2.msra.mxu0 0.0
    %453 = vmatprep.subr.mxu0 0.0
    %454 = vmatpush2.msra.mxu0 0.0
    %455 = vmatprep.subr.mxu0 0.0
    %456 = vmatpush2.msra.mxu0 0.0
    %457 = vmatprep.subr.mxu0 0.0
    %458 = vmatpush2.msra.mxu0 0.0
    %459 = vmatprep.subr.mxu0 0.0
    %460 = vmatpush2.msra.mxu0 0.0
    %461 = vmatprep.subr.mxu0 0.0
    %462 = vmatpush2.msra.mxu0 0.0
    %463 = vmatprep.subr.mxu0 0.0
    %464 = vmatpush2.msra.mxu0 0.0
    %465 = vmatprep.subr.mxu0 0.0
    %466 = vmatpush2.msra.mxu0 0.0
    %467 = vmatprep.subr.mxu0 0.0
    %468 = vmatpush2.msra.mxu0 0.0
    %469 = vmatprep.subr.mxu0 0.0
    %470 = vmatpush2.msra.mxu0 0.0
    %471 = vmatprep.mubr.f32.mxu0 0.0
    %472 = vmatmul.mubr.f32.gmra.mxu0 %v405
    %v473 = vpop.f32.mrf.mxu0
    %v474 = vadd.f32 %v99, %v473
    %v475 = vpop.f32.mrf.mxu0
    %476 = vdwg.mxu0
    %477 = vmatprep.subr.mxu0 0.0
    %478 = vmatpush1.msra.mxu0 0.0
    %479 = vmatprep.subr.mxu0 0.0
    %480 = vmatpush1.msra.mxu0 0.0
    %481 = vmatprep.subr.mxu0 0.0
    %482 = vmatpush1.msra.mxu0 0.0
    %483 = vmatprep.subr.mxu0 0.0
    %484 = vmatpush1.msra.mxu0 0.0
    %485 = vmatprep.subr.mxu0 0.0
    %486 = vmatpush1.msra.mxu0 0.0
    %487 = vmatprep.subr.mxu0 0.0
    %488 = vmatpush1.msra.mxu0 0.0
    %489 = vmatprep.subr.mxu0 0.0
    %490 = vmatpush1.msra.mxu0 0.0
    %491 = vmatprep.subr.mxu0 0.0
    %492 = vmatpush1.msra.mxu0 0.0
    %493 = vmatprep.subr.mxu0 0.0
    %494 = vmatpush1.msra.mxu0 0.0
    %495 = vmatprep.subr.mxu0 0.0
    %496 = vmatpush1.msra.mxu0 0.0
    %497 = vmatprep.subr.mxu0 0.0
    %498 = vmatpush1.msra.mxu0 0.0
    %499 = vmatprep.subr.mxu0 0.0
    %500 = vmatpush1.msra.mxu0 0.0
    %501 = vmatprep.subr.mxu0 0.0
    %502 = vmatpush1.msra.mxu0 %v55
    %503 = vmatprep.subr.mxu0 0.0
    %504 = vmatpush1.msra.mxu0 %v54
    %505 = vmatprep.subr.mxu0 0.0
    %506 = vmatpush1.msra.mxu0 %v53
    %507 = vmatprep.subr.mxu0 0.0
    %508 = vmatpush1.msra.mxu0 %v52
    %509 = vmatprep.subr.mxu0 0.0
    %510 = vmatpush2.msra.mxu0 0.0
    %511 = vmatprep.subr.mxu0 0.0
    %512 = vmatpush2.msra.mxu0 0.0
    %513 = vmatprep.subr.mxu0 0.0
    %514 = vmatpush2.msra.mxu0 0.0
    %515 = vmatprep.subr.mxu0 0.0
    %516 = vmatpush2.msra.mxu0 0.0
    %517 = vmatprep.subr.mxu0 0.0
    %518 = vmatpush2.msra.mxu0 0.0
    %519 = vmatprep.subr.mxu0 0.0
    %520 = vmatpush2.msra.mxu0 0.0
    %521 = vmatprep.subr.mxu0 0.0
    %522 = vmatpush2.msra.mxu0 0.0
    %523 = vmatprep.subr.mxu0 0.0
    %524 = vmatpush2.msra.mxu0 0.0
    %525 = vmatprep.subr.mxu0 0.0
    %526 = vmatpush2.msra.mxu0 0.0
    %527 = vmatprep.subr.mxu0 0.0
    %528 = vmatpush2.msra.mxu0 0.0
    %529 = vmatprep.subr.mxu0 0.0
    %530 = vmatpush2.msra.mxu0 0.0
    %531 = vmatprep.subr.mxu0 0.0
    %532 = vmatpush2.msra.mxu0 0.0
    %533 = vmatprep.subr.mxu0 0.0
    %534 = vmatpush2.msra.mxu0 0.0
    %535 = vmatprep.subr.mxu0 0.0
    %536 = vmatpush2.msra.mxu0 0.0
    %537 = vmatprep.subr.mxu0 0.0
    %538 = vmatpush2.msra.mxu0 0.0
    %539 = vmatprep.subr.mxu0 0.0
    %540 = vmatpush2.msra.mxu0 0.0
    %541 = vmatprep.mubr.f32.mxu0 0.0
    %542 = vmatmul.mubr.f32.gmra.mxu0 %v405
    %v543 = vpop.f32.mrf.mxu0
    %v544 = vadd.f32 %v103, %v543
    %v545 = vpop.f32.mrf.mxu0
    %546 = vdwg.mxu0
    %547 = vmatprep.subr.mxu0 0.0
    %548 = vmatpush1.msra.mxu0 0.0
    %549 = vmatprep.subr.mxu0 0.0
    %550 = vmatpush1.msra.mxu0 0.0
    %551 = vmatprep.subr.mxu0 0.0
    %552 = vmatpush1.msra.mxu0 0.0
    %553 = vmatprep.subr.mxu0 0.0
    %554 = vmatpush1.msra.mxu0 0.0
    %555 = vmatprep.subr.mxu0 0.0
    %556 = vmatpush1.msra.mxu0 0.0
    %557 = vmatprep.subr.mxu0 0.0
    %558 = vmatpush1.msra.mxu0 0.0
    %559 = vmatprep.subr.mxu0 0.0
    %560 = vmatpush1.msra.mxu0 0.0
    %561 = vmatprep.subr.mxu0 0.0
    %562 = vmatpush1.msra.mxu0 0.0
    %563 = vmatprep.subr.mxu0 0.0
    %564 = vmatpush1.msra.mxu0 0.0
    %565 = vmatprep.subr.mxu0 0.0
    %566 = vmatpush1.msra.mxu0 0.0
    %567 = vmatprep.subr.mxu0 0.0
    %568 = vmatpush1.msra.mxu0 0.0
    %569 = vmatprep.subr.mxu0 0.0
    %570 = vmatpush1.msra.mxu0 0.0
    %571 = vmatprep.subr.mxu0 0.0
    %572 = vmatpush1.msra.mxu0 %v59
    %573 = vmatprep.subr.mxu0 0.0
    %574 = vmatpush1.msra.mxu0 %v58
    %575 = vmatprep.subr.mxu0 0.0
    %576 = vmatpush1.msra.mxu0 %v57
    %577 = vmatprep.subr.mxu0 0.0
    %578 = vmatpush1.msra.mxu0 %v56
    %579 = vmatprep.subr.mxu0 0.0
    %580 = vmatpush2.msra.mxu0 0.0
    %581 = vmatprep.subr.mxu0 0.0
    %582 = vmatpush2.msra.mxu0 0.0
    %583 = vmatprep.subr.mxu0 0.0
    %584 = vmatpush2.msra.mxu0 0.0
    %585 = vmatprep.subr.mxu0 0.0
    %586 = vmatpush2.msra.mxu0 0.0
    %587 = vmatprep.subr.mxu0 0.0
    %588 = vmatpush2.msra.mxu0 0.0
    %589 = vmatprep.subr.mxu0 0.0
    %590 = vmatpush2.msra.mxu0 0.0
    %591 = vmatprep.subr.mxu0 0.0
    %592 = vmatpush2.msra.mxu0 0.0
    %593 = vmatprep.subr.mxu0 0.0
    %594 = vmatpush2.msra.mxu0 0.0
    %595 = vmatprep.subr.mxu0 0.0
    %596 = vmatpush2.msra.mxu0 0.0
    %597 = vmatprep.subr.mxu0 0.0
    %598 = vmatpush2.msra.mxu0 0.0
    %599 = vmatprep.subr.mxu0 0.0
    %600 = vmatpush2.msra.mxu0 0.0
    %601 = vmatprep.subr.mxu0 0.0
    %602 = vmatpush2.msra.mxu0 0.0
    %603 = vmatprep.subr.mxu0 0.0
    %604 = vmatpush2.msra.mxu0 0.0
    %605 = vmatprep.subr.mxu0 0.0
    %606 = vmatpush2.msra.mxu0 0.0
    %607 = vmatprep.subr.mxu0 0.0
    %608 = vmatpush2.msra.mxu0 0.0
    %609 = vmatprep.subr.mxu0 0.0
    %610 = vmatpush2.msra.mxu0 0.0
    %611 = vmatprep.mubr.f32.mxu0 0.0
    %612 = vmatmul.mubr.f32.gmra.mxu0 %v405
    %v613 = vpop.f32.mrf.mxu0
    %v614 = vadd.f32 %v107, %v613
    %v615 = vpop.f32.mrf.mxu0
    %616 = vdwg.mxu0
    %617 = vmatprep.subr.mxu0 0.0
    %618 = vmatpush1.msra.mxu0 0.0
    %619 = vmatprep.subr.mxu0 0.0
    %620 = vmatpush1.msra.mxu0 0.0
    %621 = vmatprep.subr.mxu0 0.0
    %622 = vmatpush1.msra.mxu0 0.0
    %623 = vmatprep.subr.mxu0 0.0
    %624 = vmatpush1.msra.mxu0 0.0
    %625 = vmatprep.subr.mxu0 0.0
    %626 = vmatpush1.msra.mxu0 0.0
    %627 = vmatprep.subr.mxu0 0.0
    %628 = vmatpush1.msra.mxu0 0.0
    %629 = vmatprep.subr.mxu0 0.0
    %630 = vmatpush1.msra.mxu0 0.0
    %631 = vmatprep.subr.mxu0 0.0
    %632 = vmatpush1.msra.mxu0 0.0
    %633 = vmatprep.subr.mxu0 0.0
    %634 = vmatpush1.msra.mxu0 0.0
    %635 = vmatprep.subr.mxu0 0.0
    %636 = vmatpush1.msra.mxu0 0.0
    %637 = vmatprep.subr.mxu0 0.0
    %638 = vmatpush1.msra.mxu0 0.0
    %639 = vmatprep.subr.mxu0 0.0
    %640 = vmatpush1.msra.mxu0 0.0
    %641 = vmatprep.subr.mxu0 0.0
    %642 = vmatpush1.msra.mxu0 %v63
    %643 = vmatprep.subr.mxu0 0.0
    %644 = vmatpush1.msra.mxu0 %v62
    %645 = vmatprep.subr.mxu0 0.0
    %646 = vmatpush1.msra.mxu0 %v61
    %647 = vmatprep.subr.mxu0 0.0
    %648 = vmatpush1.msra.mxu0 %v60
    %649 = vmatprep.subr.mxu0 0.0
    %650 = vmatpush2.msra.mxu0 0.0
    %651 = vmatprep.subr.mxu0 0.0
    %652 = vmatpush2.msra.mxu0 0.0
    %653 = vmatprep.subr.mxu0 0.0
    %654 = vmatpush2.msra.mxu0 0.0
    %655 = vmatprep.subr.mxu0 0.0
    %656 = vmatpush2.msra.mxu0 0.0
    %657 = vmatprep.subr.mxu0 0.0
    %658 = vmatpush2.msra.mxu0 0.0
    %659 = vmatprep.subr.mxu0 0.0
    %660 = vmatpush2.msra.mxu0 0.0
    %661 = vmatprep.subr.mxu0 0.0
    %662 = vmatpush2.msra.mxu0 0.0
    %663 = vmatprep.subr.mxu0 0.0
    %664 = vmatpush2.msra.mxu0 0.0
    %665 = vmatprep.subr.mxu0 0.0
    %666 = vmatpush2.msra.mxu0 0.0
    %667 = vmatprep.subr.mxu0 0.0
    %668 = vmatpush2.msra.mxu0 0.0
    %669 = vmatprep.subr.mxu0 0.0
    %670 = vmatpush2.msra.mxu0 0.0
    %671 = vmatprep.subr.mxu0 0.0
    %672 = vmatpush2.msra.mxu0 0.0
    %673 = vmatprep.subr.mxu0 0.0
    %674 = vmatpush2.msra.mxu0 0.0
    %675 = vmatprep.subr.mxu0 0.0
    %676 = vmatpush2.msra.mxu0 0.0
    %677 = vmatprep.subr.mxu0 0.0
    %678 = vmatpush2.msra.mxu0 0.0
    %679 = vmatprep.subr.mxu0 0.0
    %680 = vmatpush2.msra.mxu0 0.0
    %681 = vmatprep.mubr.f32.mxu0 0.0
    %682 = vmatmul.mubr.f32.gmra.mxu0 %v405
    %v683 = vpop.f32.mrf.mxu0
    %v684 = vadd.f32 %v111, %v683
    %v685 = vpop.f32.mrf.mxu0
    %686 = vdwg.mxu0
    %688 = vrot.lane.b32.xlu0 %v191, 120
    %v689 = vpop.permute.xlu0 %688
    %vm690 = vcmask 64512
    %v691 = vsel %vm690, %v191, 0
    %v693 = vsel %vm690, %v689, 0
    %695 = vmatprep.subr.mxu0 0.0
    %696 = vmatpush1.xpose.msra.mxu0 0.0
    %697 = vmatprep.subr.mxu0 0.0
    %698 = vmatpush1.xpose.msra.mxu0 0.0
    %699 = vmatprep.subr.mxu0 0.0
    %700 = vmatpush1.xpose.msra.mxu0 0.0
    %701 = vmatprep.subr.mxu0 0.0
    %702 = vmatpush1.xpose.msra.mxu0 0.0
    %703 = vmatprep.subr.mxu0 0.0
    %704 = vmatpush1.xpose.msra.mxu0 0.0
    %705 = vmatprep.subr.mxu0 0.0
    %706 = vmatpush1.xpose.msra.mxu0 0.0
    %707 = vmatprep.subr.mxu0 0.0
    %708 = vmatpush1.xpose.msra.mxu0 0.0
    %709 = vmatprep.subr.mxu0 0.0
    %710 = vmatpush1.xpose.msra.mxu0 0.0
    %711 = vmatprep.subr.mxu0 0.0
    %712 = vmatpush1.xpose.msra.mxu0 0.0
    %713 = vmatprep.subr.mxu0 0.0
    %714 = vmatpush1.xpose.msra.mxu0 0.0
    %715 = vmatprep.subr.mxu0 0.0
    %716 = vmatpush1.xpose.msra.mxu0 0.0
    %717 = vmatprep.subr.mxu0 0.0
    %718 = vmatpush1.xpose.msra.mxu0 0.0
    %719 = vmatprep.subr.mxu0 0.0
    %720 = vmatpush1.xpose.msra.mxu0 0.0
    %721 = vmatprep.subr.mxu0 0.0
    %722 = vmatpush1.xpose.msra.mxu0 0.0
    %723 = vmatprep.subr.mxu0 0.0
    %724 = vmatpush1.xpose.msra.mxu0 0.0
    %725 = vmatprep.subr.mxu0 0.0
    %726 = vmatpush1.xpose.msra.mxu0 %v693
    %727 = vmatprep.subr.mxu0 0.0
    %728 = vmatpush2.xpose.msra.mxu0 0.0
    %729 = vmatprep.subr.mxu0 0.0
    %730 = vmatpush2.xpose.msra.mxu0 0.0
    %731 = vmatprep.subr.mxu0 0.0
    %732 = vmatpush2.xpose.msra.mxu0 0.0
    %733 = vmatprep.subr.mxu0 0.0
    %734 = vmatpush2.xpose.msra.mxu0 0.0
    %735 = vmatprep.subr.mxu0 0.0
    %736 = vmatpush2.xpose.msra.mxu0 0.0
    %737 = vmatprep.subr.mxu0 0.0
    %738 = vmatpush2.xpose.msra.mxu0 0.0
    %739 = vmatprep.subr.mxu0 0.0
    %740 = vmatpush2.xpose.msra.mxu0 0.0
    %741 = vmatprep.subr.mxu0 0.0
    %742 = vmatpush2.xpose.msra.mxu0 0.0
    %743 = vmatprep.subr.mxu0 0.0
    %744 = vmatpush2.xpose.msra.mxu0 0.0
    %745 = vmatprep.subr.mxu0 0.0
    %746 = vmatpush2.xpose.msra.mxu0 0.0
    %747 = vmatprep.subr.mxu0 0.0
    %748 = vmatpush2.xpose.msra.mxu0 0.0
    %749 = vmatprep.subr.mxu0 0.0
    %750 = vmatpush2.xpose.msra.mxu0 0.0
    %751 = vmatprep.subr.mxu0 0.0
    %752 = vmatpush2.xpose.msra.mxu0 0.0
    %753 = vmatprep.subr.mxu0 0.0
    %754 = vmatpush2.xpose.msra.mxu0 0.0
    %755 = vmatprep.subr.mxu0 0.0
    %756 = vmatpush2.xpose.msra.mxu0 0.0
    %757 = vmatprep.subr.mxu0 0.0
    %758 = vmatpush2.xpose.msra.mxu0 0.0
    %759 = vmatprep.mubr.f32.mxu0 0.0
    %760 = vmatmul.mubr.f32.gmra.mxu0 %v691
    %v761 = vpop.f32.mrf.mxu0
    %v762 = vadd.f32 0.0, %v761
    %v763 = vpop.f32.mrf.mxu0
    %764 = vdwg.mxu0
    %766 = vrot.lane.b32.xlu0 %v261, 120
    %v767 = vpop.permute.xlu0 %766
    %v768 = vsel %vm690, %v261, 0
    %v770 = vsel %vm690, %v767, 0
    %772 = vmatprep.subr.mxu0 0.0
    %773 = vmatpush1.xpose.msra.mxu0 0.0
    %774 = vmatprep.subr.mxu0 0.0
    %775 = vmatpush1.xpose.msra.mxu0 0.0
    %776 = vmatprep.subr.mxu0 0.0
    %777 = vmatpush1.xpose.msra.mxu0 0.0
    %778 = vmatprep.subr.mxu0 0.0
    %779 = vmatpush1.xpose.msra.mxu0 0.0
    %780 = vmatprep.subr.mxu0 0.0
    %781 = vmatpush1.xpose.msra.mxu0 0.0
    %782 = vmatprep.subr.mxu0 0.0
    %783 = vmatpush1.xpose.msra.mxu0 0.0
    %784 = vmatprep.subr.mxu0 0.0
    %785 = vmatpush1.xpose.msra.mxu0 0.0
    %786 = vmatprep.subr.mxu0 0.0
    %787 = vmatpush1.xpose.msra.mxu0 0.0
    %788 = vmatprep.subr.mxu0 0.0
    %789 = vmatpush1.xpose.msra.mxu0 0.0
    %790 = vmatprep.subr.mxu0 0.0
    %791 = vmatpush1.xpose.msra.mxu0 0.0
    %792 = vmatprep.subr.mxu0 0.0
    %793 = vmatpush1.xpose.msra.mxu0 0.0
    %794 = vmatprep.subr.mxu0 0.0
    %795 = vmatpush1.xpose.msra.mxu0 0.0
    %796 = vmatprep.subr.mxu0 0.0
    %797 = vmatpush1.xpose.msra.mxu0 0.0
    %798 = vmatprep.subr.mxu0 0.0
    %799 = vmatpush1.xpose.msra.mxu0 0.0
    %800 = vmatprep.subr.mxu0 0.0
    %801 = vmatpush1.xpose.msra.mxu0 0.0
    %802 = vmatprep.subr.mxu0 0.0
    %803 = vmatpush1.xpose.msra.mxu0 %v770
    %804 = vmatprep.subr.mxu0 0.0
    %805 = vmatpush2.xpose.msra.mxu0 0.0
    %806 = vmatprep.subr.mxu0 0.0
    %807 = vmatpush2.xpose.msra.mxu0 0.0
    %808 = vmatprep.subr.mxu0 0.0
    %809 = vmatpush2.xpose.msra.mxu0 0.0
    %810 = vmatprep.subr.mxu0 0.0
    %811 = vmatpush2.xpose.msra.mxu0 0.0
    %812 = vmatprep.subr.mxu0 0.0
    %813 = vmatpush2.xpose.msra.mxu0 0.0
    %814 = vmatprep.subr.mxu0 0.0
    %815 = vmatpush2.xpose.msra.mxu0 0.0
    %816 = vmatprep.subr.mxu0 0.0
    %817 = vmatpush2.xpose.msra.mxu0 0.0
    %818 = vmatprep.subr.mxu0 0.0
    %819 = vmatpush2.xpose.msra.mxu0 0.0
    %820 = vmatprep.subr.mxu0 0.0
    %821 = vmatpush2.xpose.msra.mxu0 0.0
    %822 = vmatprep.subr.mxu0 0.0
    %823 = vmatpush2.xpose.msra.mxu0 0.0
    %824 = vmatprep.subr.mxu0 0.0
    %825 = vmatpush2.xpose.msra.mxu0 0.0
    %826 = vmatprep.subr.mxu0 0.0
    %827 = vmatpush2.xpose.msra.mxu0 0.0
    %828 = vmatprep.subr.mxu0 0.0
    %829 = vmatpush2.xpose.msra.mxu0 0.0
    %830 = vmatprep.subr.mxu0 0.0
    %831 = vmatpush2.xpose.msra.mxu0 0.0
    %832 = vmatprep.subr.mxu0 0.0
    %833 = vmatpush2.xpose.msra.mxu0 0.0
    %834 = vmatprep.subr.mxu0 0.0
    %835 = vmatpush2.xpose.msra.mxu0 0.0
    %836 = vmatprep.mubr.f32.mxu0 0.0
    %837 = vmatmul.mubr.f32.gmra.mxu0 %v768
    %v838 = vpop.f32.mrf.mxu0
    %v839 = vadd.f32 0.0, %v838
    %v840 = vpop.f32.mrf.mxu0
    %841 = vdwg.mxu0
    %843 = vrot.lane.b32.xlu0 %v331, 120
    %v844 = vpop.permute.xlu0 %843
    %v845 = vsel %vm690, %v331, 0
    %v847 = vsel %vm690, %v844, 0
    %849 = vmatprep.subr.mxu0 0.0
    %850 = vmatpush1.xpose.msra.mxu0 0.0
    %851 = vmatprep.subr.mxu0 0.0
    %852 = vmatpush1.xpose.msra.mxu0 0.0
    %853 = vmatprep.subr.mxu0 0.0
    %854 = vmatpush1.xpose.msra.mxu0 0.0
    %855 = vmatprep.subr.mxu0 0.0
    %856 = vmatpush1.xpose.msra.mxu0 0.0
    %857 = vmatprep.subr.mxu0 0.0
    %858 = vmatpush1.xpose.msra.mxu0 0.0
    %859 = vmatprep.subr.mxu0 0.0
    %860 = vmatpush1.xpose.msra.mxu0 0.0
    %861 = vmatprep.subr.mxu0 0.0
    %862 = vmatpush1.xpose.msra.mxu0 0.0
    %863 = vmatprep.subr.mxu0 0.0
    %864 = vmatpush1.xpose.msra.mxu0 0.0
    %865 = vmatprep.subr.mxu0 0.0
    %866 = vmatpush1.xpose.msra.mxu0 0.0
    %867 = vmatprep.subr.mxu0 0.0
    %868 = vmatpush1.xpose.msra.mxu0 0.0
    %869 = vmatprep.subr.mxu0 0.0
    %870 = vmatpush1.xpose.msra.mxu0 0.0
    %871 = vmatprep.subr.mxu0 0.0
    %872 = vmatpush1.xpose.msra.mxu0 0.0
    %873 = vmatprep.subr.mxu0 0.0
    %874 = vmatpush1.xpose.msra.mxu0 0.0
    %875 = vmatprep.subr.mxu0 0.0
    %876 = vmatpush1.xpose.msra.mxu0 0.0
    %877 = vmatprep.subr.mxu0 0.0
    %878 = vmatpush1.xpose.msra.mxu0 0.0
    %879 = vmatprep.subr.mxu0 0.0
    %880 = vmatpush1.xpose.msra.mxu0 %v847
    %881 = vmatprep.subr.mxu0 0.0
    %882 = vmatpush2.xpose.msra.mxu0 0.0
    %883 = vmatprep.subr.mxu0 0.0
    %884 = vmatpush2.xpose.msra.mxu0 0.0
    %885 = vmatprep.subr.mxu0 0.0
    %886 = vmatpush2.xpose.msra.mxu0 0.0
    %887 = vmatprep.subr.mxu0 0.0
    %888 = vmatpush2.xpose.msra.mxu0 0.0
    %889 = vmatprep.subr.mxu0 0.0
    %890 = vmatpush2.xpose.msra.mxu0 0.0
    %891 = vmatprep.subr.mxu0 0.0
    %892 = vmatpush2.xpose.msra.mxu0 0.0
    %893 = vmatprep.subr.mxu0 0.0
    %894 = vmatpush2.xpose.msra.mxu0 0.0
    %895 = vmatprep.subr.mxu0 0.0
    %896 = vmatpush2.xpose.msra.mxu0 0.0
    %897 = vmatprep.subr.mxu0 0.0
    %898 = vmatpush2.xpose.msra.mxu0 0.0
    %899 = vmatprep.subr.mxu0 0.0
    %900 = vmatpush2.xpose.msra.mxu0 0.0
    %901 = vmatprep.subr.mxu0 0.0
    %902 = vmatpush2.xpose.msra.mxu0 0.0
    %903 = vmatprep.subr.mxu0 0.0
    %904 = vmatpush2.xpose.msra.mxu0 0.0
    %905 = vmatprep.subr.mxu0 0.0
    %906 = vmatpush2.xpose.msra.mxu0 0.0
    %907 = vmatprep.subr.mxu0 0.0
    %908 = vmatpush2.xpose.msra.mxu0 0.0
    %909 = vmatprep.subr.mxu0 0.0
    %910 = vmatpush2.xpose.msra.mxu0 0.0
    %911 = vmatprep.subr.mxu0 0.0
    %912 = vmatpush2.xpose.msra.mxu0 0.0
    %913 = vmatprep.mubr.f32.mxu0 0.0
    %914 = vmatmul.mubr.f32.gmra.mxu0 %v845
    %v915 = vpop.f32.mrf.mxu0
    %v916 = vadd.f32 0.0, %v915
    %v917 = vpop.f32.mrf.mxu0
    %918 = vdwg.mxu0
    %920 = vrot.lane.b32.xlu0 %v401, 120
    %v921 = vpop.permute.xlu0 %920
    %v922 = vsel %vm690, %v401, 0
    %v924 = vsel %vm690, %v921, 0
    %926 = vmatprep.subr.mxu0 0.0
    %927 = vmatpush1.xpose.msra.mxu0 0.0
    %928 = vmatprep.subr.mxu0 0.0
    %929 = vmatpush1.xpose.msra.mxu0 0.0
    %930 = vmatprep.subr.mxu0 0.0
    %931 = vmatpush1.xpose.msra.mxu0 0.0
    %932 = vmatprep.subr.mxu0 0.0
    %933 = vmatpush1.xpose.msra.mxu0 0.0
    %934 = vmatprep.subr.mxu0 0.0
    %935 = vmatpush1.xpose.msra.mxu0 0.0
    %936 = vmatprep.subr.mxu0 0.0
    %937 = vmatpush1.xpose.msra.mxu0 0.0
    %938 = vmatprep.subr.mxu0 0.0
    %939 = vmatpush1.xpose.msra.mxu0 0.0
    %940 = vmatprep.subr.mxu0 0.0
    %941 = vmatpush1.xpose.msra.mxu0 0.0
    %942 = vmatprep.subr.mxu0 0.0
    %943 = vmatpush1.xpose.msra.mxu0 0.0
    %944 = vmatprep.subr.mxu0 0.0
    %945 = vmatpush1.xpose.msra.mxu0 0.0
    %946 = vmatprep.subr.mxu0 0.0
    %947 = vmatpush1.xpose.msra.mxu0 0.0
    %948 = vmatprep.subr.mxu0 0.0
    %949 = vmatpush1.xpose.msra.mxu0 0.0
    %950 = vmatprep.subr.mxu0 0.0
    %951 = vmatpush1.xpose.msra.mxu0 0.0
    %952 = vmatprep.subr.mxu0 0.0
    %953 = vmatpush1.xpose.msra.mxu0 0.0
    %954 = vmatprep.subr.mxu0 0.0
    %955 = vmatpush1.xpose.msra.mxu0 0.0
    %956 = vmatprep.subr.mxu0 0.0
    %957 = vmatpush1.xpose.msra.mxu0 %v924
    %958 = vmatprep.subr.mxu0 0.0
    %959 = vmatpush2.xpose.msra.mxu0 0.0
    %960 = vmatprep.subr.mxu0 0.0
    %961 = vmatpush2.xpose.msra.mxu0 0.0
    %962 = vmatprep.subr.mxu0 0.0
    %963 = vmatpush2.xpose.msra.mxu0 0.0
    %964 = vmatprep.subr.mxu0 0.0
    %965 = vmatpush2.xpose.msra.mxu0 0.0
    %966 = vmatprep.subr.mxu0 0.0
    %967 = vmatpush2.xpose.msra.mxu0 0.0
    %968 = vmatprep.subr.mxu0 0.0
    %969 = vmatpush2.xpose.msra.mxu0 0.0
    %970 = vmatprep.subr.mxu0 0.0
    %971 = vmatpush2.xpose.msra.mxu0 0.0
    %972 = vmatprep.subr.mxu0 0.0
    %973 = vmatpush2.xpose.msra.mxu0 0.0
    %974 = vmatprep.subr.mxu0 0.0
    %975 = vmatpush2.xpose.msra.mxu0 0.0
    %976 = vmatprep.subr.mxu0 0.0
    %977 = vmatpush2.xpose.msra.mxu0 0.0
    %978 = vmatprep.subr.mxu0 0.0
    %979 = vmatpush2.xpose.msra.mxu0 0.0
    %980 = vmatprep.subr.mxu0 0.0
    %981 = vmatpush2.xpose.msra.mxu0 0.0
    %982 = vmatprep.subr.mxu0 0.0
    %983 = vmatpush2.xpose.msra.mxu0 0.0
    %984 = vmatprep.subr.mxu0 0.0
    %985 = vmatpush2.xpose.msra.mxu0 0.0
    %986 = vmatprep.subr.mxu0 0.0
    %987 = vmatpush2.xpose.msra.mxu0 0.0
    %988 = vmatprep.subr.mxu0 0.0
    %989 = vmatpush2.xpose.msra.mxu0 0.0
    %990 = vmatprep.mubr.f32.mxu0 0.0
    %991 = vmatmul.mubr.f32.gmra.mxu0 %v922
    %v992 = vpop.f32.mrf.mxu0
    %v993 = vadd.f32 0.0, %v992
    %v994 = vpop.f32.mrf.mxu0
    %995 = vdwg.mxu0
    %997 = vrot.lane.b32.xlu0 %v474, 120
    %v998 = vpop.permute.xlu0 %997
    %v999 = vsel %vm690, %v474, 0
    %v1001 = vsel %vm690, %v998, 0
    %1003 = vmatprep.subr.mxu0 0.0
    %1004 = vmatpush1.xpose.msra.mxu0 0.0
    %1005 = vmatprep.subr.mxu0 0.0
    %1006 = vmatpush1.xpose.msra.mxu0 0.0
    %1007 = vmatprep.subr.mxu0 0.0
    %1008 = vmatpush1.xpose.msra.mxu0 0.0
    %1009 = vmatprep.subr.mxu0 0.0
    %1010 = vmatpush1.xpose.msra.mxu0 0.0
    %1011 = vmatprep.subr.mxu0 0.0
    %1012 = vmatpush1.xpose.msra.mxu0 0.0
    %1013 = vmatprep.subr.mxu0 0.0
    %1014 = vmatpush1.xpose.msra.mxu0 0.0
    %1015 = vmatprep.subr.mxu0 0.0
    %1016 = vmatpush1.xpose.msra.mxu0 0.0
    %1017 = vmatprep.subr.mxu0 0.0
    %1018 = vmatpush1.xpose.msra.mxu0 0.0
    %1019 = vmatprep.subr.mxu0 0.0
    %1020 = vmatpush1.xpose.msra.mxu0 0.0
    %1021 = vmatprep.subr.mxu0 0.0
    %1022 = vmatpush1.xpose.msra.mxu0 0.0
    %1023 = vmatprep.subr.mxu0 0.0
    %1024 = vmatpush1.xpose.msra.mxu0 0.0
    %1025 = vmatprep.subr.mxu0 0.0
    %1026 = vmatpush1.xpose.msra.mxu0 0.0
    %1027 = vmatprep.subr.mxu0 0.0
    %1028 = vmatpush1.xpose.msra.mxu0 0.0
    %1029 = vmatprep.subr.mxu0 0.0
    %1030 = vmatpush1.xpose.msra.mxu0 0.0
    %1031 = vmatprep.subr.mxu0 0.0
    %1032 = vmatpush1.xpose.msra.mxu0 0.0
    %1033 = vmatprep.subr.mxu0 0.0
    %1034 = vmatpush1.xpose.msra.mxu0 %v1001
    %1035 = vmatprep.subr.mxu0 0.0
    %1036 = vmatpush2.xpose.msra.mxu0 0.0
    %1037 = vmatprep.subr.mxu0 0.0
    %1038 = vmatpush2.xpose.msra.mxu0 0.0
    %1039 = vmatprep.subr.mxu0 0.0
    %1040 = vmatpush2.xpose.msra.mxu0 0.0
    %1041 = vmatprep.subr.mxu0 0.0
    %1042 = vmatpush2.xpose.msra.mxu0 0.0
    %1043 = vmatprep.subr.mxu0 0.0
    %1044 = vmatpush2.xpose.msra.mxu0 0.0
    %1045 = vmatprep.subr.mxu0 0.0
    %1046 = vmatpush2.xpose.msra.mxu0 0.0
    %1047 = vmatprep.subr.mxu0 0.0
    %1048 = vmatpush2.xpose.msra.mxu0 0.0
    %1049 = vmatprep.subr.mxu0 0.0
    %1050 = vmatpush2.xpose.msra.mxu0 0.0
    %1051 = vmatprep.subr.mxu0 0.0
    %1052 = vmatpush2.xpose.msra.mxu0 0.0
    %1053 = vmatprep.subr.mxu0 0.0
    %1054 = vmatpush2.xpose.msra.mxu0 0.0
    %1055 = vmatprep.subr.mxu0 0.0
    %1056 = vmatpush2.xpose.msra.mxu0 0.0
    %1057 = vmatprep.subr.mxu0 0.0
    %1058 = vmatpush2.xpose.msra.mxu0 0.0
    %1059 = vmatprep.subr.mxu0 0.0
    %1060 = vmatpush2.xpose.msra.mxu0 0.0
    %1061 = vmatprep.subr.mxu0 0.0
    %1062 = vmatpush2.xpose.msra.mxu0 0.0
    %1063 = vmatprep.subr.mxu0 0.0
    %1064 = vmatpush2.xpose.msra.mxu0 0.0
    %1065 = vmatprep.subr.mxu0 0.0
    %1066 = vmatpush2.xpose.msra.mxu0 0.0
    %1067 = vmatprep.mubr.f32.mxu0 0.0
    %1068 = vmatmul.mubr.f32.gmra.mxu0 %v999
    %v1069 = vpop.f32.mrf.mxu0
    %v1070 = vadd.f32 0.0, %v1069
    %v1071 = vpop.f32.mrf.mxu0
    %1072 = vdwg.mxu0
    %1074 = vrot.lane.b32.xlu0 %v544, 120
    %v1075 = vpop.permute.xlu0 %1074
    %v1076 = vsel %vm690, %v544, 0
    %v1078 = vsel %vm690, %v1075, 0
    %1080 = vmatprep.subr.mxu0 0.0
    %1081 = vmatpush1.xpose.msra.mxu0 0.0
    %1082 = vmatprep.subr.mxu0 0.0
    %1083 = vmatpush1.xpose.msra.mxu0 0.0
    %1084 = vmatprep.subr.mxu0 0.0
    %1085 = vmatpush1.xpose.msra.mxu0 0.0
    %1086 = vmatprep.subr.mxu0 0.0
    %1087 = vmatpush1.xpose.msra.mxu0 0.0
    %1088 = vmatprep.subr.mxu0 0.0
    %1089 = vmatpush1.xpose.msra.mxu0 0.0
    %1090 = vmatprep.subr.mxu0 0.0
    %1091 = vmatpush1.xpose.msra.mxu0 0.0
    %1092 = vmatprep.subr.mxu0 0.0
    %1093 = vmatpush1.xpose.msra.mxu0 0.0
    %1094 = vmatprep.subr.mxu0 0.0
    %1095 = vmatpush1.xpose.msra.mxu0 0.0
    %1096 = vmatprep.subr.mxu0 0.0
    %1097 = vmatpush1.xpose.msra.mxu0 0.0
    %1098 = vmatprep.subr.mxu0 0.0
    %1099 = vmatpush1.xpose.msra.mxu0 0.0
    %1100 = vmatprep.subr.mxu0 0.0
    %1101 = vmatpush1.xpose.msra.mxu0 0.0
    %1102 = vmatprep.subr.mxu0 0.0
    %1103 = vmatpush1.xpose.msra.mxu0 0.0
    %1104 = vmatprep.subr.mxu0 0.0
    %1105 = vmatpush1.xpose.msra.mxu0 0.0
    %1106 = vmatprep.subr.mxu0 0.0
    %1107 = vmatpush1.xpose.msra.mxu0 0.0
    %1108 = vmatprep.subr.mxu0 0.0
    %1109 = vmatpush1.xpose.msra.mxu0 0.0
    %1110 = vmatprep.subr.mxu0 0.0
    %1111 = vmatpush1.xpose.msra.mxu0 %v1078
    %1112 = vmatprep.subr.mxu0 0.0
    %1113 = vmatpush2.xpose.msra.mxu0 0.0
    %1114 = vmatprep.subr.mxu0 0.0
    %1115 = vmatpush2.xpose.msra.mxu0 0.0
    %1116 = vmatprep.subr.mxu0 0.0
    %1117 = vmatpush2.xpose.msra.mxu0 0.0
    %1118 = vmatprep.subr.mxu0 0.0
    %1119 = vmatpush2.xpose.msra.mxu0 0.0
    %1120 = vmatprep.subr.mxu0 0.0
    %1121 = vmatpush2.xpose.msra.mxu0 0.0
    %1122 = vmatprep.subr.mxu0 0.0
    %1123 = vmatpush2.xpose.msra.mxu0 0.0
    %1124 = vmatprep.subr.mxu0 0.0
    %1125 = vmatpush2.xpose.msra.mxu0 0.0
    %1126 = vmatprep.subr.mxu0 0.0
    %1127 = vmatpush2.xpose.msra.mxu0 0.0
    %1128 = vmatprep.subr.mxu0 0.0
    %1129 = vmatpush2.xpose.msra.mxu0 0.0
    %1130 = vmatprep.subr.mxu0 0.0
    %1131 = vmatpush2.xpose.msra.mxu0 0.0
    %1132 = vmatprep.subr.mxu0 0.0
    %1133 = vmatpush2.xpose.msra.mxu0 0.0
    %1134 = vmatprep.subr.mxu0 0.0
    %1135 = vmatpush2.xpose.msra.mxu0 0.0
    %1136 = vmatprep.subr.mxu0 0.0
    %1137 = vmatpush2.xpose.msra.mxu0 0.0
    %1138 = vmatprep.subr.mxu0 0.0
    %1139 = vmatpush2.xpose.msra.mxu0 0.0
    %1140 = vmatprep.subr.mxu0 0.0
    %1141 = vmatpush2.xpose.msra.mxu0 0.0
    %1142 = vmatprep.subr.mxu0 0.0
    %1143 = vmatpush2.xpose.msra.mxu0 0.0
    %1144 = vmatprep.mubr.f32.mxu0 0.0
    %1145 = vmatmul.mubr.f32.gmra.mxu0 %v1076
    %v1146 = vpop.f32.mrf.mxu0
    %v1147 = vadd.f32 0.0, %v1146
    %v1148 = vpop.f32.mrf.mxu0
    %1149 = vdwg.mxu0
    %1151 = vrot.lane.b32.xlu0 %v614, 120
    %v1152 = vpop.permute.xlu0 %1151
    %v1153 = vsel %vm690, %v614, 0
    %v1155 = vsel %vm690, %v1152, 0
    %1157 = vmatprep.subr.mxu0 0.0
    %1158 = vmatpush1.xpose.msra.mxu0 0.0
    %1159 = vmatprep.subr.mxu0 0.0
    %1160 = vmatpush1.xpose.msra.mxu0 0.0
    %1161 = vmatprep.subr.mxu0 0.0
    %1162 = vmatpush1.xpose.msra.mxu0 0.0
    %1163 = vmatprep.subr.mxu0 0.0
    %1164 = vmatpush1.xpose.msra.mxu0 0.0
    %1165 = vmatprep.subr.mxu0 0.0
    %1166 = vmatpush1.xpose.msra.mxu0 0.0
    %1167 = vmatprep.subr.mxu0 0.0
    %1168 = vmatpush1.xpose.msra.mxu0 0.0
    %1169 = vmatprep.subr.mxu0 0.0
    %1170 = vmatpush1.xpose.msra.mxu0 0.0
    %1171 = vmatprep.subr.mxu0 0.0
    %1172 = vmatpush1.xpose.msra.mxu0 0.0
    %1173 = vmatprep.subr.mxu0 0.0
    %1174 = vmatpush1.xpose.msra.mxu0 0.0
    %1175 = vmatprep.subr.mxu0 0.0
    %1176 = vmatpush1.xpose.msra.mxu0 0.0
    %1177 = vmatprep.subr.mxu0 0.0
    %1178 = vmatpush1.xpose.msra.mxu0 0.0
    %1179 = vmatprep.subr.mxu0 0.0
    %1180 = vmatpush1.xpose.msra.mxu0 0.0
    %1181 = vmatprep.subr.mxu0 0.0
    %1182 = vmatpush1.xpose.msra.mxu0 0.0
    %1183 = vmatprep.subr.mxu0 0.0
    %1184 = vmatpush1.xpose.msra.mxu0 0.0
    %1185 = vmatprep.subr.mxu0 0.0
    %1186 = vmatpush1.xpose.msra.mxu0 0.0
    %1187 = vmatprep.subr.mxu0 0.0
    %1188 = vmatpush1.xpose.msra.mxu0 %v1155
    %1189 = vmatprep.subr.mxu0 0.0
    %1190 = vmatpush2.xpose.msra.mxu0 0.0
    %1191 = vmatprep.subr.mxu0 0.0
    %1192 = vmatpush2.xpose.msra.mxu0 0.0
    %1193 = vmatprep.subr.mxu0 0.0
    %1194 = vmatpush2.xpose.msra.mxu0 0.0
    %1195 = vmatprep.subr.mxu0 0.0
    %1196 = vmatpush2.xpose.msra.mxu0 0.0
    %1197 = vmatprep.subr.mxu0 0.0
    %1198 = vmatpush2.xpose.msra.mxu0 0.0
    %1199 = vmatprep.subr.mxu0 0.0
    %1200 = vmatpush2.xpose.msra.mxu0 0.0
    %1201 = vmatprep.subr.mxu0 0.0
    %1202 = vmatpush2.xpose.msra.mxu0 0.0
    %1203 = vmatprep.subr.mxu0 0.0
    %1204 = vmatpush2.xpose.msra.mxu0 0.0
    %1205 = vmatprep.subr.mxu0 0.0
    %1206 = vmatpush2.xpose.msra.mxu0 0.0
    %1207 = vmatprep.subr.mxu0 0.0
    %1208 = vmatpush2.xpose.msra.mxu0 0.0
    %1209 = vmatprep.subr.mxu0 0.0
    %1210 = vmatpush2.xpose.msra.mxu0 0.0
    %1211 = vmatprep.subr.mxu0 0.0
    %1212 = vmatpush2.xpose.msra.mxu0 0.0
    %1213 = vmatprep.subr.mxu0 0.0
    %1214 = vmatpush2.xpose.msra.mxu0 0.0
    %1215 = vmatprep.subr.mxu0 0.0
    %1216 = vmatpush2.xpose.msra.mxu0 0.0
    %1217 = vmatprep.subr.mxu0 0.0
    %1218 = vmatpush2.xpose.msra.mxu0 0.0
    %1219 = vmatprep.subr.mxu0 0.0
    %1220 = vmatpush2.xpose.msra.mxu0 0.0
    %1221 = vmatprep.mubr.f32.mxu0 0.0
    %1222 = vmatmul.mubr.f32.gmra.mxu0 %v1153
    %v1223 = vpop.f32.mrf.mxu0
    %v1224 = vadd.f32 0.0, %v1223
    %v1225 = vpop.f32.mrf.mxu0
    %1226 = vdwg.mxu0
    %1228 = vrot.lane.b32.xlu0 %v684, 120
    %v1229 = vpop.permute.xlu0 %1228
    %v1230 = vsel %vm690, %v684, 0
    %v1232 = vsel %vm690, %v1229, 0
    %1234 = vmatprep.subr.mxu0 0.0
    %1235 = vmatpush1.xpose.msra.mxu0 0.0
    %1236 = vmatprep.subr.mxu0 0.0
    %1237 = vmatpush1.xpose.msra.mxu0 0.0
    %1238 = vmatprep.subr.mxu0 0.0
    %1239 = vmatpush1.xpose.msra.mxu0 0.0
    %1240 = vmatprep.subr.mxu0 0.0
    %1241 = vmatpush1.xpose.msra.mxu0 0.0
    %1242 = vmatprep.subr.mxu0 0.0
    %1243 = vmatpush1.xpose.msra.mxu0 0.0
    %1244 = vmatprep.subr.mxu0 0.0
    %1245 = vmatpush1.xpose.msra.mxu0 0.0
    %1246 = vmatprep.subr.mxu0 0.0
    %1247 = vmatpush1.xpose.msra.mxu0 0.0
    %1248 = vmatprep.subr.mxu0 0.0
    %1249 = vmatpush1.xpose.msra.mxu0 0.0
    %1250 = vmatprep.subr.mxu0 0.0
    %1251 = vmatpush1.xpose.msra.mxu0 0.0
    %1252 = vmatprep.subr.mxu0 0.0
    %1253 = vmatpush1.xpose.msra.mxu0 0.0
    %1254 = vmatprep.subr.mxu0 0.0
    %1255 = vmatpush1.xpose.msra.mxu0 0.0
    %1256 = vmatprep.subr.mxu0 0.0
    %1257 = vmatpush1.xpose.msra.mxu0 0.0
    %1258 = vmatprep.subr.mxu0 0.0
    %1259 = vmatpush1.xpose.msra.mxu0 0.0
    %1260 = vmatprep.subr.mxu0 0.0
    %1261 = vmatpush1.xpose.msra.mxu0 0.0
    %1262 = vmatprep.subr.mxu0 0.0
    %1263 = vmatpush1.xpose.msra.mxu0 0.0
    %1264 = vmatprep.subr.mxu0 0.0
    %1265 = vmatpush1.xpose.msra.mxu0 %v1232
    %1266 = vmatprep.subr.mxu0 0.0
    %1267 = vmatpush2.xpose.msra.mxu0 0.0
    %1268 = vmatprep.subr.mxu0 0.0
    %1269 = vmatpush2.xpose.msra.mxu0 0.0
    %1270 = vmatprep.subr.mxu0 0.0
    %1271 = vmatpush2.xpose.msra.mxu0 0.0
    %1272 = vmatprep.subr.mxu0 0.0
    %1273 = vmatpush2.xpose.msra.mxu0 0.0
    %1274 = vmatprep.subr.mxu0 0.0
    %1275 = vmatpush2.xpose.msra.mxu0 0.0
    %1276 = vmatprep.subr.mxu0 0.0
    %1277 = vmatpush2.xpose.msra.mxu0 0.0
    %1278 = vmatprep.subr.mxu0 0.0
    %1279 = vmatpush2.xpose.msra.mxu0 0.0
    %1280 = vmatprep.subr.mxu0 0.0
    %1281 = vmatpush2.xpose.msra.mxu0 0.0
    %1282 = vmatprep.subr.mxu0 0.0
    %1283 = vmatpush2.xpose.msra.mxu0 0.0
    %1284 = vmatprep.subr.mxu0 0.0
    %1285 = vmatpush2.xpose.msra.mxu0 0.0
    %1286 = vmatprep.subr.mxu0 0.0
    %1287 = vmatpush2.xpose.msra.mxu0 0.0
    %1288 = vmatprep.subr.mxu0 0.0
    %1289 = vmatpush2.xpose.msra.mxu0 0.0
    %1290 = vmatprep.subr.mxu0 0.0
    %1291 = vmatpush2.xpose.msra.mxu0 0.0
    %1292 = vmatprep.subr.mxu0 0.0
    %1293 = vmatpush2.xpose.msra.mxu0 0.0
    %1294 = vmatprep.subr.mxu0 0.0
    %1295 = vmatpush2.xpose.msra.mxu0 0.0
    %1296 = vmatprep.subr.mxu0 0.0
    %1297 = vmatpush2.xpose.msra.mxu0 0.0
    %1298 = vmatprep.mubr.f32.mxu0 0.0
    %1299 = vmatmul.mubr.f32.gmra.mxu0 %v1230
    %v1300 = vpop.f32.mrf.mxu0
    %v1301 = vadd.f32 0.0, %v1300
    %v1302 = vpop.f32.mrf.mxu0
    %1303 = vdwg.mxu0
    %v1304 = vmul.f32 %v762, 0.35355338
    %v1305 = vmul.f32 %v839, 0.35355338
    %v1306 = vmul.f32 %v916, 0.35355338
    %v1307 = vmul.f32 %v993, 0.35355338
    %v1308 = vmul.f32 %v1070, 0.35355338
    %v1309 = vmul.f32 %v1147, 0.35355338
    %v1310 = vmul.f32 %v1224, 0.35355338
    %v1311 = vmul.f32 %v1301, 0.35355338
    %v1312 = vsel %vm690, %v1304, -inf
    %1313 = vmax.xlane.f32.xlu0 %v1312
    %v1314 = vpop.xlane.xlu0 %1313
    %v1315 = vsel %vm690, %v1305, -inf
    %1316 = vmax.xlane.f32.xlu0 %v1315
    %v1317 = vpop.xlane.xlu0 %1316
    %v1318 = vsel %vm690, %v1306, -inf
    %1319 = vmax.xlane.f32.xlu0 %v1318
    %v1320 = vpop.xlane.xlu0 %1319
    %v1321 = vsel %vm690, %v1307, -inf
    %1322 = vmax.xlane.f32.xlu0 %v1321
    %v1323 = vpop.xlane.xlu0 %1322
    %v1324 = vsel %vm690, %v1308, -inf
    %1325 = vmax.xlane.f32.xlu0 %v1324
    %v1326 = vpop.xlane.xlu0 %1325
    %v1327 = vsel %vm690, %v1309, -inf
    %1328 = vmax.xlane.f32.xlu0 %v1327
    %v1329 = vpop.xlane.xlu0 %1328
    %v1330 = vsel %vm690, %v1310, -inf
    %1331 = vmax.xlane.f32.xlu0 %v1330
    %v1332 = vpop.xlane.xlu0 %1331
    %v1333 = vsel %vm690, %v1311, -inf
    %1334 = vmax.xlane.f32.xlu0 %v1333
    %v1335 = vpop.xlane.xlu0 %1334
    %v1336 = vsub.f32 %v1304, %v1314
    %v1337 = vsub.f32 %v1305, %v1317
    %v1338 = vsub.f32 %v1306, %v1320
    %v1339 = vsub.f32 %v1307, %v1323
    %v1340 = vsub.f32 %v1308, %v1326
    %v1341 = vsub.f32 %v1309, %v1329
    %v1342 = vsub.f32 %v1310, %v1332
    %v1343 = vsub.f32 %v1311, %v1335
    %v1344 = vmul.f32 %v1336, 1.442695
    %v1345 = vpow.pop %v1344
    %v1346 = vmul.f32 %v1337, 1.442695
    %v1347 = vpow.pop %v1346
    %v1348 = vmul.f32 %v1338, 1.442695
    %v1349 = vpow.pop %v1348
    %v1350 = vmul.f32 %v1339, 1.442695
    %v1351 = vpow.pop %v1350
    %v1352 = vmul.f32 %v1340, 1.442695
    %v1353 = vpow.pop %v1352
    %v1354 = vmul.f32 %v1341, 1.442695
    %v1355 = vpow.pop %v1354
    %v1356 = vmul.f32 %v1342, 1.442695
    %v1357 = vpow.pop %v1356
    %v1358 = vmul.f32 %v1343, 1.442695
    %v1359 = vpow.pop %v1358
    %v1360 = vsel %vm690, %v1345, 0.0
    %1361 = vadd.xlane.f32.xlu0 %v1360
    %v1362 = vpop.xlane.xlu0 %1361
    %v1363 = vsel %vm690, %v1347, 0.0
    %1364 = vadd.xlane.f32.xlu0 %v1363
    %v1365 = vpop.xlane.xlu0 %1364
    %v1366 = vsel %vm690, %v1349, 0.0
    %1367 = vadd.xlane.f32.xlu0 %v1366
    %v1368 = vpop.xlane.xlu0 %1367
    %v1369 = vsel %vm690, %v1351, 0.0
    %1370 = vadd.xlane.f32.xlu0 %v1369
    %v1371 = vpop.xlane.xlu0 %1370
    %v1372 = vsel %vm690, %v1353, 0.0
    %1373 = vadd.xlane.f32.xlu0 %v1372
    %v1374 = vpop.xlane.xlu0 %1373
    %v1375 = vsel %vm690, %v1355, 0.0
    %1376 = vadd.xlane.f32.xlu0 %v1375
    %v1377 = vpop.xlane.xlu0 %1376
    %v1378 = vsel %vm690, %v1357, 0.0
    %1379 = vadd.xlane.f32.xlu0 %v1378
    %v1380 = vpop.xlane.xlu0 %1379
    %v1381 = vsel %vm690, %v1359, 0.0
    %1382 = vadd.xlane.f32.xlu0 %v1381
    %v1383 = vpop.xlane.xlu0 %1382
    %v1384 = vrcp.pop %v1362
    %v1385 = vrcp.pop %v1365
    %v1386 = vrcp.pop %v1368
    %v1387 = vrcp.pop %v1371
    %v1388 = vrcp.pop %v1374
    %v1389 = vrcp.pop %v1377
    %v1390 = vrcp.pop %v1380
    %v1391 = vrcp.pop %v1383
    %v1392 = vmul.f32 %v1345, %v1384
    %v1393 = vmul.f32 %v1347, %v1385
    %v1394 = vmul.f32 %v1349, %v1386
    %v1395 = vmul.f32 %v1351, %v1387
    %v1396 = vmul.f32 %v1353, %v1388
    %v1397 = vmul.f32 %v1355, %v1389
    %v1398 = vmul.f32 %v1357, %v1390
    %v1399 = vmul.f32 %v1359, %v1391
    %1400 = vrot.lane.b32.xlu0 %v191, 112
    %v1401 = vpop.permute.xlu0 %1400
    %v1404 = vsel %vm690, %v1392, 0
    %1406 = vmatprep.subr.mxu0 0.0
    %1407 = vmatpush1.msra.mxu0 0.0
    %1408 = vmatprep.subr.mxu0 0.0
    %1409 = vmatpush1.msra.mxu0 0.0
    %1410 = vmatprep.subr.mxu0 0.0
    %1411 = vmatpush1.msra.mxu0 0.0
    %1412 = vmatprep.subr.mxu0 0.0
    %1413 = vmatpush1.msra.mxu0 0.0
    %1414 = vmatprep.subr.mxu0 0.0
    %1415 = vmatpush1.msra.mxu0 0.0
    %1416 = vmatprep.subr.mxu0 0.0
    %1417 = vmatpush1.msra.mxu0 0.0
    %1418 = vmatprep.subr.mxu0 0.0
    %1419 = vmatpush1.msra.mxu0 0.0
    %1420 = vmatprep.subr.mxu0 0.0
    %1421 = vmatpush1.msra.mxu0 0.0
    %1422 = vmatprep.subr.mxu0 0.0
    %1423 = vmatpush1.msra.mxu0 0.0
    %1424 = vmatprep.subr.mxu0 0.0
    %1425 = vmatpush1.msra.mxu0 0.0
    %1426 = vmatprep.subr.mxu0 0.0
    %1427 = vmatpush1.msra.mxu0 0.0
    %1428 = vmatprep.subr.mxu0 0.0
    %1429 = vmatpush1.msra.mxu0 0.0
    %1430 = vmatprep.subr.mxu0 0.0
    %1431 = vmatpush1.msra.mxu0 0.0
    %1432 = vmatprep.subr.mxu0 0.0
    %1433 = vmatpush1.msra.mxu0 0.0
    %1434 = vmatprep.subr.mxu0 0.0
    %1435 = vmatpush1.msra.mxu0 0.0
    %1436 = vmatprep.subr.mxu0 0.0
    %1437 = vmatpush1.msra.mxu0 %v1401
    %1438 = vmatprep.subr.mxu0 0.0
    %1439 = vmatpush2.msra.mxu0 0.0
    %1440 = vmatprep.subr.mxu0 0.0
    %1441 = vmatpush2.msra.mxu0 0.0
    %1442 = vmatprep.subr.mxu0 0.0
    %1443 = vmatpush2.msra.mxu0 0.0
    %1444 = vmatprep.subr.mxu0 0.0
    %1445 = vmatpush2.msra.mxu0 0.0
    %1446 = vmatprep.subr.mxu0 0.0
    %1447 = vmatpush2.msra.mxu0 0.0
    %1448 = vmatprep.subr.mxu0 0.0
    %1449 = vmatpush2.msra.mxu0 0.0
    %1450 = vmatprep.subr.mxu0 0.0
    %1451 = vmatpush2.msra.mxu0 0.0
    %1452 = vmatprep.subr.mxu0 0.0
    %1453 = vmatpush2.msra.mxu0 0.0
    %1454 = vmatprep.subr.mxu0 0.0
    %1455 = vmatpush2.msra.mxu0 0.0
    %1456 = vmatprep.subr.mxu0 0.0
    %1457 = vmatpush2.msra.mxu0 0.0
    %1458 = vmatprep.subr.mxu0 0.0
    %1459 = vmatpush2.msra.mxu0 0.0
    %1460 = vmatprep.subr.mxu0 0.0
    %1461 = vmatpush2.msra.mxu0 0.0
    %1462 = vmatprep.subr.mxu0 0.0
    %1463 = vmatpush2.msra.mxu0 0.0
    %1464 = vmatprep.subr.mxu0 0.0
    %1465 = vmatpush2.msra.mxu0 0.0
    %1466 = vmatprep.subr.mxu0 0.0
    %1467 = vmatpush2.msra.mxu0 0.0
    %1468 = vmatprep.subr.mxu0 0.0
    %1469 = vmatpush2.msra.mxu0 0.0
    %1470 = vmatprep.mubr.f32.mxu0 0.0
    %1471 = vmatmul.mubr.f32.gmra.mxu0 %v1404
    %v1472 = vpop.f32.mrf.mxu0
    %v1473 = vadd.f32 0.0, %v1472
    %v1474 = vpop.f32.mrf.mxu0
    %1475 = vdwg.mxu0
    %1476 = vrot.lane.b32.xlu0 %v261, 112
    %v1477 = vpop.permute.xlu0 %1476
    %v1480 = vsel %vm690, %v1393, 0
    %1482 = vmatprep.subr.mxu0 0.0
    %1483 = vmatpush1.msra.mxu0 0.0
    %1484 = vmatprep.subr.mxu0 0.0
    %1485 = vmatpush1.msra.mxu0 0.0
    %1486 = vmatprep.subr.mxu0 0.0
    %1487 = vmatpush1.msra.mxu0 0.0
    %1488 = vmatprep.subr.mxu0 0.0
    %1489 = vmatpush1.msra.mxu0 0.0
    %1490 = vmatprep.subr.mxu0 0.0
    %1491 = vmatpush1.msra.mxu0 0.0
    %1492 = vmatprep.subr.mxu0 0.0
    %1493 = vmatpush1.msra.mxu0 0.0
    %1494 = vmatprep.subr.mxu0 0.0
    %1495 = vmatpush1.msra.mxu0 0.0
    %1496 = vmatprep.subr.mxu0 0.0
    %1497 = vmatpush1.msra.mxu0 0.0
    %1498 = vmatprep.subr.mxu0 0.0
    %1499 = vmatpush1.msra.mxu0 0.0
    %1500 = vmatprep.subr.mxu0 0.0
    %1501 = vmatpush1.msra.mxu0 0.0
    %1502 = vmatprep.subr.mxu0 0.0
    %1503 = vmatpush1.msra.mxu0 0.0
    %1504 = vmatprep.subr.mxu0 0.0
    %1505 = vmatpush1.msra.mxu0 0.0
    %1506 = vmatprep.subr.mxu0 0.0
    %1507 = vmatpush1.msra.mxu0 0.0
    %1508 = vmatprep.subr.mxu0 0.0
    %1509 = vmatpush1.msra.mxu0 0.0
    %1510 = vmatprep.subr.mxu0 0.0
    %1511 = vmatpush1.msra.mxu0 0.0
    %1512 = vmatprep.subr.mxu0 0.0
    %1513 = vmatpush1.msra.mxu0 %v1477
    %1514 = vmatprep.subr.mxu0 0.0
    %1515 = vmatpush2.msra.mxu0 0.0
    %1516 = vmatprep.subr.mxu0 0.0
    %1517 = vmatpush2.msra.mxu0 0.0
    %1518 = vmatprep.subr.mxu0 0.0
    %1519 = vmatpush2.msra.mxu0 0.0
    %1520 = vmatprep.subr.mxu0 0.0
    %1521 = vmatpush2.msra.mxu0 0.0
    %1522 = vmatprep.subr.mxu0 0.0
    %1523 = vmatpush2.msra.mxu0 0.0
    %1524 = vmatprep.subr.mxu0 0.0
    %1525 = vmatpush2.msra.mxu0 0.0
    %1526 = vmatprep.subr.mxu0 0.0
    %1527 = vmatpush2.msra.mxu0 0.0
    %1528 = vmatprep.subr.mxu0 0.0
    %1529 = vmatpush2.msra.mxu0 0.0
    %1530 = vmatprep.subr.mxu0 0.0
    %1531 = vmatpush2.msra.mxu0 0.0
    %1532 = vmatprep.subr.mxu0 0.0
    %1533 = vmatpush2.msra.mxu0 0.0
    %1534 = vmatprep.subr.mxu0 0.0
    %1535 = vmatpush2.msra.mxu0 0.0
    %1536 = vmatprep.subr.mxu0 0.0
    %1537 = vmatpush2.msra.mxu0 0.0
    %1538 = vmatprep.subr.mxu0 0.0
    %1539 = vmatpush2.msra.mxu0 0.0
    %1540 = vmatprep.subr.mxu0 0.0
    %1541 = vmatpush2.msra.mxu0 0.0
    %1542 = vmatprep.subr.mxu0 0.0
    %1543 = vmatpush2.msra.mxu0 0.0
    %1544 = vmatprep.subr.mxu0 0.0
    %1545 = vmatpush2.msra.mxu0 0.0
    %1546 = vmatprep.mubr.f32.mxu0 0.0
    %1547 = vmatmul.mubr.f32.gmra.mxu0 %v1480
    %v1548 = vpop.f32.mrf.mxu0
    %v1549 = vadd.f32 0.0, %v1548
    %v1550 = vpop.f32.mrf.mxu0
    %1551 = vdwg.mxu0
    %1552 = vrot.lane.b32.xlu0 %v331, 112
    %v1553 = vpop.permute.xlu0 %1552
    %v1556 = vsel %vm690, %v1394, 0
    %1558 = vmatprep.subr.mxu0 0.0
    %1559 = vmatpush1.msra.mxu0 0.0
    %1560 = vmatprep.subr.mxu0 0.0
    %1561 = vmatpush1.msra.mxu0 0.0
    %1562 = vmatprep.subr.mxu0 0.0
    %1563 = vmatpush1.msra.mxu0 0.0
    %1564 = vmatprep.subr.mxu0 0.0
    %1565 = vmatpush1.msra.mxu0 0.0
    %1566 = vmatprep.subr.mxu0 0.0
    %1567 = vmatpush1.msra.mxu0 0.0
    %1568 = vmatprep.subr.mxu0 0.0
    %1569 = vmatpush1.msra.mxu0 0.0
    %1570 = vmatprep.subr.mxu0 0.0
    %1571 = vmatpush1.msra.mxu0 0.0
    %1572 = vmatprep.subr.mxu0 0.0
    %1573 = vmatpush1.msra.mxu0 0.0
    %1574 = vmatprep.subr.mxu0 0.0
    %1575 = vmatpush1.msra.mxu0 0.0
    %1576 = vmatprep.subr.mxu0 0.0
    %1577 = vmatpush1.msra.mxu0 0.0
    %1578 = vmatprep.subr.mxu0 0.0
    %1579 = vmatpush1.msra.mxu0 0.0
    %1580 = vmatprep.subr.mxu0 0.0
    %1581 = vmatpush1.msra.mxu0 0.0
    %1582 = vmatprep.subr.mxu0 0.0
    %1583 = vmatpush1.msra.mxu0 0.0
    %1584 = vmatprep.subr.mxu0 0.0
    %1585 = vmatpush1.msra.mxu0 0.0
    %1586 = vmatprep.subr.mxu0 0.0
    %1587 = vmatpush1.msra.mxu0 0.0
    %1588 = vmatprep.subr.mxu0 0.0
    %1589 = vmatpush1.msra.mxu0 %v1553
    %1590 = vmatprep.subr.mxu0 0.0
    %1591 = vmatpush2.msra.mxu0 0.0
    %1592 = vmatprep.subr.mxu0 0.0
    %1593 = vmatpush2.msra.mxu0 0.0
    %1594 = vmatprep.subr.mxu0 0.0
    %1595 = vmatpush2.msra.mxu0 0.0
    %1596 = vmatprep.subr.mxu0 0.0
    %1597 = vmatpush2.msra.mxu0 0.0
    %1598 = vmatprep.subr.mxu0 0.0
    %1599 = vmatpush2.msra.mxu0 0.0
    %1600 = vmatprep.subr.mxu0 0.0
    %1601 = vmatpush2.msra.mxu0 0.0
    %1602 = vmatprep.subr.mxu0 0.0
    %1603 = vmatpush2.msra.mxu0 0.0
    %1604 = vmatprep.subr.mxu0 0.0
    %1605 = vmatpush2.msra.mxu0 0.0
    %1606 = vmatprep.subr.mxu0 0.0
    %1607 = vmatpush2.msra.mxu0 0.0
    %1608 = vmatprep.subr.mxu0 0.0
    %1609 = vmatpush2.msra.mxu0 0.0
    %1610 = vmatprep.subr.mxu0 0.0
    %1611 = vmatpush2.msra.mxu0 0.0
    %1612 = vmatprep.subr.mxu0 0.0
    %1613 = vmatpush2.msra.mxu0 0.0
    %1614 = vmatprep.subr.mxu0 0.0
    %1615 = vmatpush2.msra.mxu0 0.0
    %1616 = vmatprep.subr.mxu0 0.0
    %1617 = vmatpush2.msra.mxu0 0.0
    %1618 = vmatprep.subr.mxu0 0.0
    %1619 = vmatpush2.msra.mxu0 0.0
    %1620 = vmatprep.subr.mxu0 0.0
    %1621 = vmatpush2.msra.mxu0 0.0
    %1622 = vmatprep.mubr.f32.mxu0 0.0
    %1623 = vmatmul.mubr.f32.gmra.mxu0 %v1556
    %v1624 = vpop.f32.mrf.mxu0
    %v1625 = vadd.f32 0.0, %v1624
    %v1626 = vpop.f32.mrf.mxu0
    %1627 = vdwg.mxu0
    %1628 = vrot.lane.b32.xlu0 %v401, 112
    %v1629 = vpop.permute.xlu0 %1628
    %v1632 = vsel %vm690, %v1395, 0
    %1634 = vmatprep.subr.mxu0 0.0
    %1635 = vmatpush1.msra.mxu0 0.0
    %1636 = vmatprep.subr.mxu0 0.0
    %1637 = vmatpush1.msra.mxu0 0.0
    %1638 = vmatprep.subr.mxu0 0.0
    %1639 = vmatpush1.msra.mxu0 0.0
    %1640 = vmatprep.subr.mxu0 0.0
    %1641 = vmatpush1.msra.mxu0 0.0
    %1642 = vmatprep.subr.mxu0 0.0
    %1643 = vmatpush1.msra.mxu0 0.0
    %1644 = vmatprep.subr.mxu0 0.0
    %1645 = vmatpush1.msra.mxu0 0.0
    %1646 = vmatprep.subr.mxu0 0.0
    %1647 = vmatpush1.msra.mxu0 0.0
    %1648 = vmatprep.subr.mxu0 0.0
    %1649 = vmatpush1.msra.mxu0 0.0
    %1650 = vmatprep.subr.mxu0 0.0
    %1651 = vmatpush1.msra.mxu0 0.0
    %1652 = vmatprep.subr.mxu0 0.0
    %1653 = vmatpush1.msra.mxu0 0.0
    %1654 = vmatprep.subr.mxu0 0.0
    %1655 = vmatpush1.msra.mxu0 0.0
    %1656 = vmatprep.subr.mxu0 0.0
    %1657 = vmatpush1.msra.mxu0 0.0
    %1658 = vmatprep.subr.mxu0 0.0
    %1659 = vmatpush1.msra.mxu0 0.0
    %1660 = vmatprep.subr.mxu0 0.0
    %1661 = vmatpush1.msra.mxu0 0.0
    %1662 = vmatprep.subr.mxu0 0.0
    %1663 = vmatpush1.msra.mxu0 0.0
    %1664 = vmatprep.subr.mxu0 0.0
    %1665 = vmatpush1.msra.mxu0 %v1629
    %1666 = vmatprep.subr.mxu0 0.0
    %1667 = vmatpush2.msra.mxu0 0.0
    %1668 = vmatprep.subr.mxu0 0.0
    %1669 = vmatpush2.msra.mxu0 0.0
    %1670 = vmatprep.subr.mxu0 0.0
    %1671 = vmatpush2.msra.mxu0 0.0
    %1672 = vmatprep.subr.mxu0 0.0
    %1673 = vmatpush2.msra.mxu0 0.0
    %1674 = vmatprep.subr.mxu0 0.0
    %1675 = vmatpush2.msra.mxu0 0.0
    %1676 = vmatprep.subr.mxu0 0.0
    %1677 = vmatpush2.msra.mxu0 0.0
    %1678 = vmatprep.subr.mxu0 0.0
    %1679 = vmatpush2.msra.mxu0 0.0
    %1680 = vmatprep.subr.mxu0 0.0
    %1681 = vmatpush2.msra.mxu0 0.0
    %1682 = vmatprep.subr.mxu0 0.0
    %1683 = vmatpush2.msra.mxu0 0.0
    %1684 = vmatprep.subr.mxu0 0.0
    %1685 = vmatpush2.msra.mxu0 0.0
    %1686 = vmatprep.subr.mxu0 0.0
    %1687 = vmatpush2.msra.mxu0 0.0
    %1688 = vmatprep.subr.mxu0 0.0
    %1689 = vmatpush2.msra.mxu0 0.0
    %1690 = vmatprep.subr.mxu0 0.0
    %1691 = vmatpush2.msra.mxu0 0.0
    %1692 = vmatprep.subr.mxu0 0.0
    %1693 = vmatpush2.msra.mxu0 0.0
    %1694 = vmatprep.subr.mxu0 0.0
    %1695 = vmatpush2.msra.mxu0 0.0
    %1696 = vmatprep.subr.mxu0 0.0
    %1697 = vmatpush2.msra.mxu0 0.0
    %1698 = vmatprep.mubr.f32.mxu0 0.0
    %1699 = vmatmul.mubr.f32.gmra.mxu0 %v1632
    %v1700 = vpop.f32.mrf.mxu0
    %v1701 = vadd.f32 0.0, %v1700
    %v1702 = vpop.f32.mrf.mxu0
    %1703 = vdwg.mxu0
    %1704 = vrot.lane.b32.xlu0 %v474, 112
    %v1705 = vpop.permute.xlu0 %1704
    %v1708 = vsel %vm690, %v1396, 0
    %1710 = vmatprep.subr.mxu0 0.0
    %1711 = vmatpush1.msra.mxu0 0.0
    %1712 = vmatprep.subr.mxu0 0.0
    %1713 = vmatpush1.msra.mxu0 0.0
    %1714 = vmatprep.subr.mxu0 0.0
    %1715 = vmatpush1.msra.mxu0 0.0
    %1716 = vmatprep.subr.mxu0 0.0
    %1717 = vmatpush1.msra.mxu0 0.0
    %1718 = vmatprep.subr.mxu0 0.0
    %1719 = vmatpush1.msra.mxu0 0.0
    %1720 = vmatprep.subr.mxu0 0.0
    %1721 = vmatpush1.msra.mxu0 0.0
    %1722 = vmatprep.subr.mxu0 0.0
    %1723 = vmatpush1.msra.mxu0 0.0
    %1724 = vmatprep.subr.mxu0 0.0
    %1725 = vmatpush1.msra.mxu0 0.0
    %1726 = vmatprep.subr.mxu0 0.0
    %1727 = vmatpush1.msra.mxu0 0.0
    %1728 = vmatprep.subr.mxu0 0.0
    %1729 = vmatpush1.msra.mxu0 0.0
    %1730 = vmatprep.subr.mxu0 0.0
    %1731 = vmatpush1.msra.mxu0 0.0
    %1732 = vmatprep.subr.mxu0 0.0
    %1733 = vmatpush1.msra.mxu0 0.0
    %1734 = vmatprep.subr.mxu0 0.0
    %1735 = vmatpush1.msra.mxu0 0.0
    %1736 = vmatprep.subr.mxu0 0.0
    %1737 = vmatpush1.msra.mxu0 0.0
    %1738 = vmatprep.subr.mxu0 0.0
    %1739 = vmatpush1.msra.mxu0 0.0
    %1740 = vmatprep.subr.mxu0 0.0
    %1741 = vmatpush1.msra.mxu0 %v1705
    %1742 = vmatprep.subr.mxu0 0.0
    %1743 = vmatpush2.msra.mxu0 0.0
    %1744 = vmatprep.subr.mxu0 0.0
    %1745 = vmatpush2.msra.mxu0 0.0
    %1746 = vmatprep.subr.mxu0 0.0
    %1747 = vmatpush2.msra.mxu0 0.0
    %1748 = vmatprep.subr.mxu0 0.0
    %1749 = vmatpush2.msra.mxu0 0.0
    %1750 = vmatprep.subr.mxu0 0.0
    %1751 = vmatpush2.msra.mxu0 0.0
    %1752 = vmatprep.subr.mxu0 0.0
    %1753 = vmatpush2.msra.mxu0 0.0
    %1754 = vmatprep.subr.mxu0 0.0
    %1755 = vmatpush2.msra.mxu0 0.0
    %1756 = vmatprep.subr.mxu0 0.0
    %1757 = vmatpush2.msra.mxu0 0.0
    %1758 = vmatprep.subr.mxu0 0.0
    %1759 = vmatpush2.msra.mxu0 0.0
    %1760 = vmatprep.subr.mxu0 0.0
    %1761 = vmatpush2.msra.mxu0 0.0
    %1762 = vmatprep.subr.mxu0 0.0
    %1763 = vmatpush2.msra.mxu0 0.0
    %1764 = vmatprep.subr.mxu0 0.0
    %1765 = vmatpush2.msra.mxu0 0.0
    %1766 = vmatprep.subr.mxu0 0.0
    %1767 = vmatpush2.msra.mxu0 0.0
    %1768 = vmatprep.subr.mxu0 0.0
    %1769 = vmatpush2.msra.mxu0 0.0
    %1770 = vmatprep.subr.mxu0 0.0
    %1771 = vmatpush2.msra.mxu0 0.0
    %1772 = vmatprep.subr.mxu0 0.0
    %1773 = vmatpush2.msra.mxu0 0.0
    %1774 = vmatprep.mubr.f32.mxu0 0.0
    %1775 = vmatmul.mubr.f32.gmra.mxu0 %v1708
    %v1776 = vpop.f32.mrf.mxu0
    %v1777 = vadd.f32 0.0, %v1776
    %v1778 = vpop.f32.mrf.mxu0
    %1779 = vdwg.mxu0
    %1780 = vrot.lane.b32.xlu0 %v544, 112
    %v1781 = vpop.permute.xlu0 %1780
    %v1784 = vsel %vm690, %v1397, 0
    %1786 = vmatprep.subr.mxu0 0.0
    %1787 = vmatpush1.msra.mxu0 0.0
    %1788 = vmatprep.subr.mxu0 0.0
    %1789 = vmatpush1.msra.mxu0 0.0
    %1790 = vmatprep.subr.mxu0 0.0
    %1791 = vmatpush1.msra.mxu0 0.0
    %1792 = vmatprep.subr.mxu0 0.0
    %1793 = vmatpush1.msra.mxu0 0.0
    %1794 = vmatprep.subr.mxu0 0.0
    %1795 = vmatpush1.msra.mxu0 0.0
    %1796 = vmatprep.subr.mxu0 0.0
    %1797 = vmatpush1.msra.mxu0 0.0
    %1798 = vmatprep.subr.mxu0 0.0
    %1799 = vmatpush1.msra.mxu0 0.0
    %1800 = vmatprep.subr.mxu0 0.0
    %1801 = vmatpush1.msra.mxu0 0.0
    %1802 = vmatprep.subr.mxu0 0.0
    %1803 = vmatpush1.msra.mxu0 0.0
    %1804 = vmatprep.subr.mxu0 0.0
    %1805 = vmatpush1.msra.mxu0 0.0
    %1806 = vmatprep.subr.mxu0 0.0
    %1807 = vmatpush1.msra.mxu0 0.0
    %1808 = vmatprep.subr.mxu0 0.0
    %1809 = vmatpush1.msra.mxu0 0.0
    %1810 = vmatprep.subr.mxu0 0.0
    %1811 = vmatpush1.msra.mxu0 0.0
    %1812 = vmatprep.subr.mxu0 0.0
    %1813 = vmatpush1.msra.mxu0 0.0
    %1814 = vmatprep.subr.mxu0 0.0
    %1815 = vmatpush1.msra.mxu0 0.0
    %1816 = vmatprep.subr.mxu0 0.0
    %1817 = vmatpush1.msra.mxu0 %v1781
    %1818 = vmatprep.subr.mxu0 0.0
    %1819 = vmatpush2.msra.mxu0 0.0
    %1820 = vmatprep.subr.mxu0 0.0
    %1821 = vmatpush2.msra.mxu0 0.0
    %1822 = vmatprep.subr.mxu0 0.0
    %1823 = vmatpush2.msra.mxu0 0.0
    %1824 = vmatprep.subr.mxu0 0.0
    %1825 = vmatpush2.msra.mxu0 0.0
    %1826 = vmatprep.subr.mxu0 0.0
    %1827 = vmatpush2.msra.mxu0 0.0
    %1828 = vmatprep.subr.mxu0 0.0
    %1829 = vmatpush2.msra.mxu0 0.0
    %1830 = vmatprep.subr.mxu0 0.0
    %1831 = vmatpush2.msra.mxu0 0.0
    %1832 = vmatprep.subr.mxu0 0.0
    %1833 = vmatpush2.msra.mxu0 0.0
    %1834 = vmatprep.subr.mxu0 0.0
    %1835 = vmatpush2.msra.mxu0 0.0
    %1836 = vmatprep.subr.mxu0 0.0
    %1837 = vmatpush2.msra.mxu0 0.0
    %1838 = vmatprep.subr.mxu0 0.0
    %1839 = vmatpush2.msra.mxu0 0.0
    %1840 = vmatprep.subr.mxu0 0.0
    %1841 = vmatpush2.msra.mxu0 0.0
    %1842 = vmatprep.subr.mxu0 0.0
    %1843 = vmatpush2.msra.mxu0 0.0
    %1844 = vmatprep.subr.mxu0 0.0
    %1845 = vmatpush2.msra.mxu0 0.0
    %1846 = vmatprep.subr.mxu0 0.0
    %1847 = vmatpush2.msra.mxu0 0.0
    %1848 = vmatprep.subr.mxu0 0.0
    %1849 = vmatpush2.msra.mxu0 0.0
    %1850 = vmatprep.mubr.f32.mxu0 0.0
    %1851 = vmatmul.mubr.f32.gmra.mxu0 %v1784
    %v1852 = vpop.f32.mrf.mxu0
    %v1853 = vadd.f32 0.0, %v1852
    %v1854 = vpop.f32.mrf.mxu0
    %1855 = vdwg.mxu0
    %1856 = vrot.lane.b32.xlu0 %v614, 112
    %v1857 = vpop.permute.xlu0 %1856
    %v1860 = vsel %vm690, %v1398, 0
    %1862 = vmatprep.subr.mxu0 0.0
    %1863 = vmatpush1.msra.mxu0 0.0
    %1864 = vmatprep.subr.mxu0 0.0
    %1865 = vmatpush1.msra.mxu0 0.0
    %1866 = vmatprep.subr.mxu0 0.0
    %1867 = vmatpush1.msra.mxu0 0.0
    %1868 = vmatprep.subr.mxu0 0.0
    %1869 = vmatpush1.msra.mxu0 0.0
    %1870 = vmatprep.subr.mxu0 0.0
    %1871 = vmatpush1.msra.mxu0 0.0
    %1872 = vmatprep.subr.mxu0 0.0
    %1873 = vmatpush1.msra.mxu0 0.0
    %1874 = vmatprep.subr.mxu0 0.0
    %1875 = vmatpush1.msra.mxu0 0.0
    %1876 = vmatprep.subr.mxu0 0.0
    %1877 = vmatpush1.msra.mxu0 0.0
    %1878 = vmatprep.subr.mxu0 0.0
    %1879 = vmatpush1.msra.mxu0 0.0
    %1880 = vmatprep.subr.mxu0 0.0
    %1881 = vmatpush1.msra.mxu0 0.0
    %1882 = vmatprep.subr.mxu0 0.0
    %1883 = vmatpush1.msra.mxu0 0.0
    %1884 = vmatprep.subr.mxu0 0.0
    %1885 = vmatpush1.msra.mxu0 0.0
    %1886 = vmatprep.subr.mxu0 0.0
    %1887 = vmatpush1.msra.mxu0 0.0
    %1888 = vmatprep.subr.mxu0 0.0
    %1889 = vmatpush1.msra.mxu0 0.0
    %1890 = vmatprep.subr.mxu0 0.0
    %1891 = vmatpush1.msra.mxu0 0.0
    %1892 = vmatprep.subr.mxu0 0.0
    %1893 = vmatpush1.msra.mxu0 %v1857
    %1894 = vmatprep.subr.mxu0 0.0
    %1895 = vmatpush2.msra.mxu0 0.0
    %1896 = vmatprep.subr.mxu0 0.0
    %1897 = vmatpush2.msra.mxu0 0.0
    %1898 = vmatprep.subr.mxu0 0.0
    %1899 = vmatpush2.msra.mxu0 0.0
    %1900 = vmatprep.subr.mxu0 0.0
    %1901 = vmatpush2.msra.mxu0 0.0
    %1902 = vmatprep.subr.mxu0 0.0
    %1903 = vmatpush2.msra.mxu0 0.0
    %1904 = vmatprep.subr.mxu0 0.0
    %1905 = vmatpush2.msra.mxu0 0.0
    %1906 = vmatprep.subr.mxu0 0.0
    %1907 = vmatpush2.msra.mxu0 0.0
    %1908 = vmatprep.subr.mxu0 0.0
    %1909 = vmatpush2.msra.mxu0 0.0
    %1910 = vmatprep.subr.mxu0 0.0
    %1911 = vmatpush2.msra.mxu0 0.0
    %1912 = vmatprep.subr.mxu0 0.0
    %1913 = vmatpush2.msra.mxu0 0.0
    %1914 = vmatprep.subr.mxu0 0.0
    %1915 = vmatpush2.msra.mxu0 0.0
    %1916 = vmatprep.subr.mxu0 0.0
    %1917 = vmatpush2.msra.mxu0 0.0
    %1918 = vmatprep.subr.mxu0 0.0
    %1919 = vmatpush2.msra.mxu0 0.0
    %1920 = vmatprep.subr.mxu0 0.0
    %1921 = vmatpush2.msra.mxu0 0.0
    %1922 = vmatprep.subr.mxu0 0.0
    %1923 = vmatpush2.msra.mxu0 0.0
    %1924 = vmatprep.subr.mxu0 0.0
    %1925 = vmatpush2.msra.mxu0 0.0
    %1926 = vmatprep.mubr.f32.mxu0 0.0
    %1927 = vmatmul.mubr.f32.gmra.mxu0 %v1860
    %v1928 = vpop.f32.mrf.mxu0
    %v1929 = vadd.f32 0.0, %v1928
    %v1930 = vpop.f32.mrf.mxu0
    %1931 = vdwg.mxu0
    %1932 = vrot.lane.b32.xlu0 %v684, 112
    %v1933 = vpop.permute.xlu0 %1932
    %v1936 = vsel %vm690, %v1399, 0
    %1938 = vmatprep.subr.mxu0 0.0
    %1939 = vmatpush1.msra.mxu0 0.0
    %1940 = vmatprep.subr.mxu0 0.0
    %1941 = vmatpush1.msra.mxu0 0.0
    %1942 = vmatprep.subr.mxu0 0.0
    %1943 = vmatpush1.msra.mxu0 0.0
    %1944 = vmatprep.subr.mxu0 0.0
    %1945 = vmatpush1.msra.mxu0 0.0
    %1946 = vmatprep.subr.mxu0 0.0
    %1947 = vmatpush1.msra.mxu0 0.0
    %1948 = vmatprep.subr.mxu0 0.0
    %1949 = vmatpush1.msra.mxu0 0.0
    %1950 = vmatprep.subr.mxu0 0.0
    %1951 = vmatpush1.msra.mxu0 0.0
    %1952 = vmatprep.subr.mxu0 0.0
    %1953 = vmatpush1.msra.mxu0 0.0
    %1954 = vmatprep.subr.mxu0 0.0
    %1955 = vmatpush1.msra.mxu0 0.0
    %1956 = vmatprep.subr.mxu0 0.0
    %1957 = vmatpush1.msra.mxu0 0.0
    %1958 = vmatprep.subr.mxu0 0.0
    %1959 = vmatpush1.msra.mxu0 0.0
    %1960 = vmatprep.subr.mxu0 0.0
    %1961 = vmatpush1.msra.mxu0 0.0
    %1962 = vmatprep.subr.mxu0 0.0
    %1963 = vmatpush1.msra.mxu0 0.0
    %1964 = vmatprep.subr.mxu0 0.0
    %1965 = vmatpush1.msra.mxu0 0.0
    %1966 = vmatprep.subr.mxu0 0.0
    %1967 = vmatpush1.msra.mxu0 0.0
    %1968 = vmatprep.subr.mxu0 0.0
    %1969 = vmatpush1.msra.mxu0 %v1933
    %1970 = vmatprep.subr.mxu0 0.0
    %1971 = vmatpush2.msra.mxu0 0.0
    %1972 = vmatprep.subr.mxu0 0.0
    %1973 = vmatpush2.msra.mxu0 0.0
    %1974 = vmatprep.subr.mxu0 0.0
    %1975 = vmatpush2.msra.mxu0 0.0
    %1976 = vmatprep.subr.mxu0 0.0
    %1977 = vmatpush2.msra.mxu0 0.0
    %1978 = vmatprep.subr.mxu0 0.0
    %1979 = vmatpush2.msra.mxu0 0.0
    %1980 = vmatprep.subr.mxu0 0.0
    %1981 = vmatpush2.msra.mxu0 0.0
    %1982 = vmatprep.subr.mxu0 0.0
    %1983 = vmatpush2.msra.mxu0 0.0
    %1984 = vmatprep.subr.mxu0 0.0
    %1985 = vmatpush2.msra.mxu0 0.0
    %1986 = vmatprep.subr.mxu0 0.0
    %1987 = vmatpush2.msra.mxu0 0.0
    %1988 = vmatprep.subr.mxu0 0.0
    %1989 = vmatpush2.msra.mxu0 0.0
    %1990 = vmatprep.subr.mxu0 0.0
    %1991 = vmatpush2.msra.mxu0 0.0
    %1992 = vmatprep.subr.mxu0 0.0
    %1993 = vmatpush2.msra.mxu0 0.0
    %1994 = vmatprep.subr.mxu0 0.0
    %1995 = vmatpush2.msra.mxu0 0.0
    %1996 = vmatprep.subr.mxu0 0.0
    %1997 = vmatpush2.msra.mxu0 0.0
    %1998 = vmatprep.subr.mxu0 0.0
    %1999 = vmatpush2.msra.mxu0 0.0
    %2000 = vmatprep.subr.mxu0 0.0
    %2001 = vmatpush2.msra.mxu0 0.0
    %2002 = vmatprep.mubr.f32.mxu0 0.0
    %2003 = vmatmul.mubr.f32.gmra.mxu0 %v1936
    %v2004 = vpop.f32.mrf.mxu0
    %v2005 = vadd.f32 0.0, %v2004
    %v2006 = vpop.f32.mrf.mxu0
    %2007 = vdwg.mxu0
    %v2008 = vld [vmem:[%s3] sm:$0xff]
    %v2009 = vld [vmem:[%s3 + $0x8] sm:$0xff]
    %v2010 = vld [vmem:[%s3 + $0x10] sm:$0xff]
    %v2011 = vld [vmem:[%s3 + $0x18] sm:$0xff]
    %v2012 = vld [vmem:[%s3 + $0x20] sm:$0xff]
    %v2013 = vld [vmem:[%s3 + $0x28] sm:$0xff]
    %v2014 = vld [vmem:[%s3 + $0x30] sm:$0xff]
    %v2015 = vld [vmem:[%s3 + $0x38] sm:$0xff]
    %v2017 = vsel %vm690, %v1473, 0
    %2019 = vmatprep.subr.mxu0 0.0
    %2020 = vmatpush1.msra.mxu0 0.0
    %2021 = vmatprep.subr.mxu0 0.0
    %2022 = vmatpush1.msra.mxu0 0.0
    %2023 = vmatprep.subr.mxu0 0.0
    %2024 = vmatpush1.msra.mxu0 0.0
    %2025 = vmatprep.subr.mxu0 0.0
    %2026 = vmatpush1.msra.mxu0 0.0
    %2027 = vmatprep.subr.mxu0 0.0
    %2028 = vmatpush1.msra.mxu0 0.0
    %2029 = vmatprep.subr.mxu0 0.0
    %2030 = vmatpush1.msra.mxu0 0.0
    %2031 = vmatprep.subr.mxu0 0.0
    %2032 = vmatpush1.msra.mxu0 0.0
    %2033 = vmatprep.subr.mxu0 0.0
    %2034 = vmatpush1.msra.mxu0 0.0
    %2035 = vmatprep.subr.mxu0 0.0
    %2036 = vmatpush1.msra.mxu0 0.0
    %2037 = vmatprep.subr.mxu0 0.0
    %2038 = vmatpush1.msra.mxu0 0.0
    %2039 = vmatprep.subr.mxu0 0.0
    %2040 = vmatpush1.msra.mxu0 0.0
    %2041 = vmatprep.subr.mxu0 0.0
    %2042 = vmatpush1.msra.mxu0 0.0
    %2043 = vmatprep.subr.mxu0 0.0
    %2044 = vmatpush1.msra.mxu0 0.0
    %2045 = vmatprep.subr.mxu0 0.0
    %2046 = vmatpush1.msra.mxu0 0.0
    %2047 = vmatprep.subr.mxu0 0.0
    %2048 = vmatpush1.msra.mxu0 0.0
    %2049 = vmatprep.subr.mxu0 0.0
    %2050 = vmatpush1.msra.mxu0 %v2008
    %2051 = vmatprep.subr.mxu0 0.0
    %2052 = vmatpush2.msra.mxu0 0.0
    %2053 = vmatprep.subr.mxu0 0.0
    %2054 = vmatpush2.msra.mxu0 0.0
    %2055 = vmatprep.subr.mxu0 0.0
    %2056 = vmatpush2.msra.mxu0 0.0
    %2057 = vmatprep.subr.mxu0 0.0
    %2058 = vmatpush2.msra.mxu0 0.0
    %2059 = vmatprep.subr.mxu0 0.0
    %2060 = vmatpush2.msra.mxu0 0.0
    %2061 = vmatprep.subr.mxu0 0.0
    %2062 = vmatpush2.msra.mxu0 0.0
    %2063 = vmatprep.subr.mxu0 0.0
    %2064 = vmatpush2.msra.mxu0 0.0
    %2065 = vmatprep.subr.mxu0 0.0
    %2066 = vmatpush2.msra.mxu0 0.0
    %2067 = vmatprep.subr.mxu0 0.0
    %2068 = vmatpush2.msra.mxu0 0.0
    %2069 = vmatprep.subr.mxu0 0.0
    %2070 = vmatpush2.msra.mxu0 0.0
    %2071 = vmatprep.subr.mxu0 0.0
    %2072 = vmatpush2.msra.mxu0 0.0
    %2073 = vmatprep.subr.mxu0 0.0
    %2074 = vmatpush2.msra.mxu0 0.0
    %2075 = vmatprep.subr.mxu0 0.0
    %2076 = vmatpush2.msra.mxu0 0.0
    %2077 = vmatprep.subr.mxu0 0.0
    %2078 = vmatpush2.msra.mxu0 0.0
    %2079 = vmatprep.subr.mxu0 0.0
    %2080 = vmatpush2.msra.mxu0 0.0
    %2081 = vmatprep.subr.mxu0 0.0
    %2082 = vmatpush2.msra.mxu0 0.0
    %2083 = vmatprep.mubr.f32.mxu0 0.0
    %2084 = vmatmul.mubr.f32.gmra.mxu0 %v2017
    %v2085 = vpop.f32.mrf.mxu0
    %v2086 = vadd.f32 0.0, %v2085
    %v2087 = vpop.f32.mrf.mxu0
    %2088 = vdwg.mxu0
    %v2090 = vsel %vm690, %v1549, 0
    %2092 = vmatprep.subr.mxu0 0.0
    %2093 = vmatpush1.msra.mxu0 0.0
    %2094 = vmatprep.subr.mxu0 0.0
    %2095 = vmatpush1.msra.mxu0 0.0
    %2096 = vmatprep.subr.mxu0 0.0
    %2097 = vmatpush1.msra.mxu0 0.0
    %2098 = vmatprep.subr.mxu0 0.0
    %2099 = vmatpush1.msra.mxu0 0.0
    %2100 = vmatprep.subr.mxu0 0.0
    %2101 = vmatpush1.msra.mxu0 0.0
    %2102 = vmatprep.subr.mxu0 0.0
    %2103 = vmatpush1.msra.mxu0 0.0
    %2104 = vmatprep.subr.mxu0 0.0
    %2105 = vmatpush1.msra.mxu0 0.0
    %2106 = vmatprep.subr.mxu0 0.0
    %2107 = vmatpush1.msra.mxu0 0.0
    %2108 = vmatprep.subr.mxu0 0.0
    %2109 = vmatpush1.msra.mxu0 0.0
    %2110 = vmatprep.subr.mxu0 0.0
    %2111 = vmatpush1.msra.mxu0 0.0
    %2112 = vmatprep.subr.mxu0 0.0
    %2113 = vmatpush1.msra.mxu0 0.0
    %2114 = vmatprep.subr.mxu0 0.0
    %2115 = vmatpush1.msra.mxu0 0.0
    %2116 = vmatprep.subr.mxu0 0.0
    %2117 = vmatpush1.msra.mxu0 0.0
    %2118 = vmatprep.subr.mxu0 0.0
    %2119 = vmatpush1.msra.mxu0 0.0
    %2120 = vmatprep.subr.mxu0 0.0
    %2121 = vmatpush1.msra.mxu0 0.0
    %2122 = vmatprep.subr.mxu0 0.0
    %2123 = vmatpush1.msra.mxu0 %v2009
    %2124 = vmatprep.subr.mxu0 0.0
    %2125 = vmatpush2.msra.mxu0 0.0
    %2126 = vmatprep.subr.mxu0 0.0
    %2127 = vmatpush2.msra.mxu0 0.0
    %2128 = vmatprep.subr.mxu0 0.0
    %2129 = vmatpush2.msra.mxu0 0.0
    %2130 = vmatprep.subr.mxu0 0.0
    %2131 = vmatpush2.msra.mxu0 0.0
    %2132 = vmatprep.subr.mxu0 0.0
    %2133 = vmatpush2.msra.mxu0 0.0
    %2134 = vmatprep.subr.mxu0 0.0
    %2135 = vmatpush2.msra.mxu0 0.0
    %2136 = vmatprep.subr.mxu0 0.0
    %2137 = vmatpush2.msra.mxu0 0.0
    %2138 = vmatprep.subr.mxu0 0.0
    %2139 = vmatpush2.msra.mxu0 0.0
    %2140 = vmatprep.subr.mxu0 0.0
    %2141 = vmatpush2.msra.mxu0 0.0
    %2142 = vmatprep.subr.mxu0 0.0
    %2143 = vmatpush2.msra.mxu0 0.0
    %2144 = vmatprep.subr.mxu0 0.0
    %2145 = vmatpush2.msra.mxu0 0.0
    %2146 = vmatprep.subr.mxu0 0.0
    %2147 = vmatpush2.msra.mxu0 0.0
    %2148 = vmatprep.subr.mxu0 0.0
    %2149 = vmatpush2.msra.mxu0 0.0
    %2150 = vmatprep.subr.mxu0 0.0
    %2151 = vmatpush2.msra.mxu0 0.0
    %2152 = vmatprep.subr.mxu0 0.0
    %2153 = vmatpush2.msra.mxu0 0.0
    %2154 = vmatprep.subr.mxu0 0.0
    %2155 = vmatpush2.msra.mxu0 0.0
    %2156 = vmatprep.mubr.f32.mxu0 0.0
    %2157 = vmatmul.mubr.f32.gmra.mxu0 %v2090
    %v2158 = vpop.f32.mrf.mxu0
    %v2159 = vadd.f32 0.0, %v2158
    %v2160 = vpop.f32.mrf.mxu0
    %2161 = vdwg.mxu0
    %v2163 = vsel %vm690, %v1625, 0
    %2165 = vmatprep.subr.mxu0 0.0
    %2166 = vmatpush1.msra.mxu0 0.0
    %2167 = vmatprep.subr.mxu0 0.0
    %2168 = vmatpush1.msra.mxu0 0.0
    %2169 = vmatprep.subr.mxu0 0.0
    %2170 = vmatpush1.msra.mxu0 0.0
    %2171 = vmatprep.subr.mxu0 0.0
    %2172 = vmatpush1.msra.mxu0 0.0
    %2173 = vmatprep.subr.mxu0 0.0
    %2174 = vmatpush1.msra.mxu0 0.0
    %2175 = vmatprep.subr.mxu0 0.0
    %2176 = vmatpush1.msra.mxu0 0.0
    %2177 = vmatprep.subr.mxu0 0.0
    %2178 = vmatpush1.msra.mxu0 0.0
    %2179 = vmatprep.subr.mxu0 0.0
    %2180 = vmatpush1.msra.mxu0 0.0
    %2181 = vmatprep.subr.mxu0 0.0
    %2182 = vmatpush1.msra.mxu0 0.0
    %2183 = vmatprep.subr.mxu0 0.0
    %2184 = vmatpush1.msra.mxu0 0.0
    %2185 = vmatprep.subr.mxu0 0.0
    %2186 = vmatpush1.msra.mxu0 0.0
    %2187 = vmatprep.subr.mxu0 0.0
    %2188 = vmatpush1.msra.mxu0 0.0
    %2189 = vmatprep.subr.mxu0 0.0
    %2190 = vmatpush1.msra.mxu0 0.0
    %2191 = vmatprep.subr.mxu0 0.0
    %2192 = vmatpush1.msra.mxu0 0.0
    %2193 = vmatprep.subr.mxu0 0.0
    %2194 = vmatpush1.msra.mxu0 0.0
    %2195 = vmatprep.subr.mxu0 0.0
    %2196 = vmatpush1.msra.mxu0 %v2010
    %2197 = vmatprep.subr.mxu0 0.0
    %2198 = vmatpush2.msra.mxu0 0.0
    %2199 = vmatprep.subr.mxu0 0.0
    %2200 = vmatpush2.msra.mxu0 0.0
    %2201 = vmatprep.subr.mxu0 0.0
    %2202 = vmatpush2.msra.mxu0 0.0
    %2203 = vmatprep.subr.mxu0 0.0
    %2204 = vmatpush2.msra.mxu0 0.0
    %2205 = vmatprep.subr.mxu0 0.0
    %2206 = vmatpush2.msra.mxu0 0.0
    %2207 = vmatprep.subr.mxu0 0.0
    %2208 = vmatpush2.msra.mxu0 0.0
    %2209 = vmatprep.subr.mxu0 0.0
    %2210 = vmatpush2.msra.mxu0 0.0
    %2211 = vmatprep.subr.mxu0 0.0
    %2212 = vmatpush2.msra.mxu0 0.0
    %2213 = vmatprep.subr.mxu0 0.0
    %2214 = vmatpush2.msra.mxu0 0.0
    %2215 = vmatprep.subr.mxu0 0.0
    %2216 = vmatpush2.msra.mxu0 0.0
    %2217 = vmatprep.subr.mxu0 0.0
    %2218 = vmatpush2.msra.mxu0 0.0
    %2219 = vmatprep.subr.mxu0 0.0
    %2220 = vmatpush2.msra.mxu0 0.0
    %2221 = vmatprep.subr.mxu0 0.0
    %2222 = vmatpush2.msra.mxu0 0.0
    %2223 = vmatprep.subr.mxu0 0.0
    %2224 = vmatpush2.msra.mxu0 0.0
    %2225 = vmatprep.subr.mxu0 0.0
    %2226 = vmatpush2.msra.mxu0 0.0
    %2227 = vmatprep.subr.mxu0 0.0
    %2228 = vmatpush2.msra.mxu0 0.0
    %2229 = vmatprep.mubr.f32.mxu0 0.0
    %2230 = vmatmul.mubr.f32.gmra.mxu0 %v2163
    %v2231 = vpop.f32.mrf.mxu0
    %v2232 = vadd.f32 0.0, %v2231
    %v2233 = vpop.f32.mrf.mxu0
    %2234 = vdwg.mxu0
    %v2236 = vsel %vm690, %v1701, 0
    %2238 = vmatprep.subr.mxu0 0.0
    %2239 = vmatpush1.msra.mxu0 0.0
    %2240 = vmatprep.subr.mxu0 0.0
    %2241 = vmatpush1.msra.mxu0 0.0
    %2242 = vmatprep.subr.mxu0 0.0
    %2243 = vmatpush1.msra.mxu0 0.0
    %2244 = vmatprep.subr.mxu0 0.0
    %2245 = vmatpush1.msra.mxu0 0.0
    %2246 = vmatprep.subr.mxu0 0.0
    %2247 = vmatpush1.msra.mxu0 0.0
    %2248 = vmatprep.subr.mxu0 0.0
    %2249 = vmatpush1.msra.mxu0 0.0
    %2250 = vmatprep.subr.mxu0 0.0
    %2251 = vmatpush1.msra.mxu0 0.0
    %2252 = vmatprep.subr.mxu0 0.0
    %2253 = vmatpush1.msra.mxu0 0.0
    %2254 = vmatprep.subr.mxu0 0.0
    %2255 = vmatpush1.msra.mxu0 0.0
    %2256 = vmatprep.subr.mxu0 0.0
    %2257 = vmatpush1.msra.mxu0 0.0
    %2258 = vmatprep.subr.mxu0 0.0
    %2259 = vmatpush1.msra.mxu0 0.0
    %2260 = vmatprep.subr.mxu0 0.0
    %2261 = vmatpush1.msra.mxu0 0.0
    %2262 = vmatprep.subr.mxu0 0.0
    %2263 = vmatpush1.msra.mxu0 0.0
    %2264 = vmatprep.subr.mxu0 0.0
    %2265 = vmatpush1.msra.mxu0 0.0
    %2266 = vmatprep.subr.mxu0 0.0
    %2267 = vmatpush1.msra.mxu0 0.0
    %2268 = vmatprep.subr.mxu0 0.0
    %2269 = vmatpush1.msra.mxu0 %v2011
    %2270 = vmatprep.subr.mxu0 0.0
    %2271 = vmatpush2.msra.mxu0 0.0
    %2272 = vmatprep.subr.mxu0 0.0
    %2273 = vmatpush2.msra.mxu0 0.0
    %2274 = vmatprep.subr.mxu0 0.0
    %2275 = vmatpush2.msra.mxu0 0.0
    %2276 = vmatprep.subr.mxu0 0.0
    %2277 = vmatpush2.msra.mxu0 0.0
    %2278 = vmatprep.subr.mxu0 0.0
    %2279 = vmatpush2.msra.mxu0 0.0
    %2280 = vmatprep.subr.mxu0 0.0
    %2281 = vmatpush2.msra.mxu0 0.0
    %2282 = vmatprep.subr.mxu0 0.0
    %2283 = vmatpush2.msra.mxu0 0.0
    %2284 = vmatprep.subr.mxu0 0.0
    %2285 = vmatpush2.msra.mxu0 0.0
    %2286 = vmatprep.subr.mxu0 0.0
    %2287 = vmatpush2.msra.mxu0 0.0
    %2288 = vmatprep.subr.mxu0 0.0
    %2289 = vmatpush2.msra.mxu0 0.0
    %2290 = vmatprep.subr.mxu0 0.0
    %2291 = vmatpush2.msra.mxu0 0.0
    %2292 = vmatprep.subr.mxu0 0.0
    %2293 = vmatpush2.msra.mxu0 0.0
    %2294 = vmatprep.subr.mxu0 0.0
    %2295 = vmatpush2.msra.mxu0 0.0
    %2296 = vmatprep.subr.mxu0 0.0
    %2297 = vmatpush2.msra.mxu0 0.0
    %2298 = vmatprep.subr.mxu0 0.0
    %2299 = vmatpush2.msra.mxu0 0.0
    %2300 = vmatprep.subr.mxu0 0.0
    %2301 = vmatpush2.msra.mxu0 0.0
    %2302 = vmatprep.mubr.f32.mxu0 0.0
    %2303 = vmatmul.mubr.f32.gmra.mxu0 %v2236
    %v2304 = vpop.f32.mrf.mxu0
    %v2305 = vadd.f32 0.0, %v2304
    %v2306 = vpop.f32.mrf.mxu0
    %2307 = vdwg.mxu0
    %v2309 = vsel %vm690, %v1777, 0
    %2311 = vmatprep.subr.mxu0 0.0
    %2312 = vmatpush1.msra.mxu0 0.0
    %2313 = vmatprep.subr.mxu0 0.0
    %2314 = vmatpush1.msra.mxu0 0.0
    %2315 = vmatprep.subr.mxu0 0.0
    %2316 = vmatpush1.msra.mxu0 0.0
    %2317 = vmatprep.subr.mxu0 0.0
    %2318 = vmatpush1.msra.mxu0 0.0
    %2319 = vmatprep.subr.mxu0 0.0
    %2320 = vmatpush1.msra.mxu0 0.0
    %2321 = vmatprep.subr.mxu0 0.0
    %2322 = vmatpush1.msra.mxu0 0.0
    %2323 = vmatprep.subr.mxu0 0.0
    %2324 = vmatpush1.msra.mxu0 0.0
    %2325 = vmatprep.subr.mxu0 0.0
    %2326 = vmatpush1.msra.mxu0 0.0
    %2327 = vmatprep.subr.mxu0 0.0
    %2328 = vmatpush1.msra.mxu0 0.0
    %2329 = vmatprep.subr.mxu0 0.0
    %2330 = vmatpush1.msra.mxu0 0.0
    %2331 = vmatprep.subr.mxu0 0.0
    %2332 = vmatpush1.msra.mxu0 0.0
    %2333 = vmatprep.subr.mxu0 0.0
    %2334 = vmatpush1.msra.mxu0 0.0
    %2335 = vmatprep.subr.mxu0 0.0
    %2336 = vmatpush1.msra.mxu0 0.0
    %2337 = vmatprep.subr.mxu0 0.0
    %2338 = vmatpush1.msra.mxu0 0.0
    %2339 = vmatprep.subr.mxu0 0.0
    %2340 = vmatpush1.msra.mxu0 0.0
    %2341 = vmatprep.subr.mxu0 0.0
    %2342 = vmatpush1.msra.mxu0 %v2012
    %2343 = vmatprep.subr.mxu0 0.0
    %2344 = vmatpush2.msra.mxu0 0.0
    %2345 = vmatprep.subr.mxu0 0.0
    %2346 = vmatpush2.msra.mxu0 0.0
    %2347 = vmatprep.subr.mxu0 0.0
    %2348 = vmatpush2.msra.mxu0 0.0
    %2349 = vmatprep.subr.mxu0 0.0
    %2350 = vmatpush2.msra.mxu0 0.0
    %2351 = vmatprep.subr.mxu0 0.0
    %2352 = vmatpush2.msra.mxu0 0.0
    %2353 = vmatprep.subr.mxu0 0.0
    %2354 = vmatpush2.msra.mxu0 0.0
    %2355 = vmatprep.subr.mxu0 0.0
    %2356 = vmatpush2.msra.mxu0 0.0
    %2357 = vmatprep.subr.mxu0 0.0
    %2358 = vmatpush2.msra.mxu0 0.0
    %2359 = vmatprep.subr.mxu0 0.0
    %2360 = vmatpush2.msra.mxu0 0.0
    %2361 = vmatprep.subr.mxu0 0.0
    %2362 = vmatpush2.msra.mxu0 0.0
    %2363 = vmatprep.subr.mxu0 0.0
    %2364 = vmatpush2.msra.mxu0 0.0
    %2365 = vmatprep.subr.mxu0 0.0
    %2366 = vmatpush2.msra.mxu0 0.0
    %2367 = vmatprep.subr.mxu0 0.0
    %2368 = vmatpush2.msra.mxu0 0.0
    %2369 = vmatprep.subr.mxu0 0.0
    %2370 = vmatpush2.msra.mxu0 0.0
    %2371 = vmatprep.subr.mxu0 0.0
    %2372 = vmatpush2.msra.mxu0 0.0
    %2373 = vmatprep.subr.mxu0 0.0
    %2374 = vmatpush2.msra.mxu0 0.0
    %2375 = vmatprep.mubr.f32.mxu0 0.0
    %2376 = vmatmul.mubr.f32.gmra.mxu0 %v2309
    %v2377 = vpop.f32.mrf.mxu0
    %v2378 = vadd.f32 0.0, %v2377
    %v2379 = vpop.f32.mrf.mxu0
    %2380 = vdwg.mxu0
    %v2382 = vsel %vm690, %v1853, 0
    %2384 = vmatprep.subr.mxu0 0.0
    %2385 = vmatpush1.msra.mxu0 0.0
    %2386 = vmatprep.subr.mxu0 0.0
    %2387 = vmatpush1.msra.mxu0 0.0
    %2388 = vmatprep.subr.mxu0 0.0
    %2389 = vmatpush1.msra.mxu0 0.0
    %2390 = vmatprep.subr.mxu0 0.0
    %2391 = vmatpush1.msra.mxu0 0.0
    %2392 = vmatprep.subr.mxu0 0.0
    %2393 = vmatpush1.msra.mxu0 0.0
    %2394 = vmatprep.subr.mxu0 0.0
    %2395 = vmatpush1.msra.mxu0 0.0
    %2396 = vmatprep.subr.mxu0 0.0
    %2397 = vmatpush1.msra.mxu0 0.0
    %2398 = vmatprep.subr.mxu0 0.0
    %2399 = vmatpush1.msra.mxu0 0.0
    %2400 = vmatprep.subr.mxu0 0.0
    %2401 = vmatpush1.msra.mxu0 0.0
    %2402 = vmatprep.subr.mxu0 0.0
    %2403 = vmatpush1.msra.mxu0 0.0
    %2404 = vmatprep.subr.mxu0 0.0
    %2405 = vmatpush1.msra.mxu0 0.0
    %2406 = vmatprep.subr.mxu0 0.0
    %2407 = vmatpush1.msra.mxu0 0.0
    %2408 = vmatprep.subr.mxu0 0.0
    %2409 = vmatpush1.msra.mxu0 0.0
    %2410 = vmatprep.subr.mxu0 0.0
    %2411 = vmatpush1.msra.mxu0 0.0
    %2412 = vmatprep.subr.mxu0 0.0
    %2413 = vmatpush1.msra.mxu0 0.0
    %2414 = vmatprep.subr.mxu0 0.0
    %2415 = vmatpush1.msra.mxu0 %v2013
    %2416 = vmatprep.subr.mxu0 0.0
    %2417 = vmatpush2.msra.mxu0 0.0
    %2418 = vmatprep.subr.mxu0 0.0
    %2419 = vmatpush2.msra.mxu0 0.0
    %2420 = vmatprep.subr.mxu0 0.0
    %2421 = vmatpush2.msra.mxu0 0.0
    %2422 = vmatprep.subr.mxu0 0.0
    %2423 = vmatpush2.msra.mxu0 0.0
    %2424 = vmatprep.subr.mxu0 0.0
    %2425 = vmatpush2.msra.mxu0 0.0
    %2426 = vmatprep.subr.mxu0 0.0
    %2427 = vmatpush2.msra.mxu0 0.0
    %2428 = vmatprep.subr.mxu0 0.0
    %2429 = vmatpush2.msra.mxu0 0.0
    %2430 = vmatprep.subr.mxu0 0.0
    %2431 = vmatpush2.msra.mxu0 0.0
    %2432 = vmatprep.subr.mxu0 0.0
    %2433 = vmatpush2.msra.mxu0 0.0
    %2434 = vmatprep.subr.mxu0 0.0
    %2435 = vmatpush2.msra.mxu0 0.0
    %2436 = vmatprep.subr.mxu0 0.0
    %2437 = vmatpush2.msra.mxu0 0.0
    %2438 = vmatprep.subr.mxu0 0.0
    %2439 = vmatpush2.msra.mxu0 0.0
    %2440 = vmatprep.subr.mxu0 0.0
    %2441 = vmatpush2.msra.mxu0 0.0
    %2442 = vmatprep.subr.mxu0 0.0
    %2443 = vmatpush2.msra.mxu0 0.0
    %2444 = vmatprep.subr.mxu0 0.0
    %2445 = vmatpush2.msra.mxu0 0.0
    %2446 = vmatprep.subr.mxu0 0.0
    %2447 = vmatpush2.msra.mxu0 0.0
    %2448 = vmatprep.mubr.f32.mxu0 0.0
    %2449 = vmatmul.mubr.f32.gmra.mxu0 %v2382
    %v2450 = vpop.f32.mrf.mxu0
    %v2451 = vadd.f32 0.0, %v2450
    %v2452 = vpop.f32.mrf.mxu0
    %2453 = vdwg.mxu0
    %v2455 = vsel %vm690, %v1929, 0
    %2457 = vmatprep.subr.mxu0 0.0
    %2458 = vmatpush1.msra.mxu0 0.0
    %2459 = vmatprep.subr.mxu0 0.0
    %2460 = vmatpush1.msra.mxu0 0.0
    %2461 = vmatprep.subr.mxu0 0.0
    %2462 = vmatpush1.msra.mxu0 0.0
    %2463 = vmatprep.subr.mxu0 0.0
    %2464 = vmatpush1.msra.mxu0 0.0
    %2465 = vmatprep.subr.mxu0 0.0
    %2466 = vmatpush1.msra.mxu0 0.0
    %2467 = vmatprep.subr.mxu0 0.0
    %2468 = vmatpush1.msra.mxu0 0.0
    %2469 = vmatprep.subr.mxu0 0.0
    %2470 = vmatpush1.msra.mxu0 0.0
    %2471 = vmatprep.subr.mxu0 0.0
    %2472 = vmatpush1.msra.mxu0 0.0
    %2473 = vmatprep.subr.mxu0 0.0
    %2474 = vmatpush1.msra.mxu0 0.0
    %2475 = vmatprep.subr.mxu0 0.0
    %2476 = vmatpush1.msra.mxu0 0.0
    %2477 = vmatprep.subr.mxu0 0.0
    %2478 = vmatpush1.msra.mxu0 0.0
    %2479 = vmatprep.subr.mxu0 0.0
    %2480 = vmatpush1.msra.mxu0 0.0
    %2481 = vmatprep.subr.mxu0 0.0
    %2482 = vmatpush1.msra.mxu0 0.0
    %2483 = vmatprep.subr.mxu0 0.0
    %2484 = vmatpush1.msra.mxu0 0.0
    %2485 = vmatprep.subr.mxu0 0.0
    %2486 = vmatpush1.msra.mxu0 0.0
    %2487 = vmatprep.subr.mxu0 0.0
    %2488 = vmatpush1.msra.mxu0 %v2014
    %2489 = vmatprep.subr.mxu0 0.0
    %2490 = vmatpush2.msra.mxu0 0.0
    %2491 = vmatprep.subr.mxu0 0.0
    %2492 = vmatpush2.msra.mxu0 0.0
    %2493 = vmatprep.subr.mxu0 0.0
    %2494 = vmatpush2.msra.mxu0 0.0
    %2495 = vmatprep.subr.mxu0 0.0
    %2496 = vmatpush2.msra.mxu0 0.0
    %2497 = vmatprep.subr.mxu0 0.0
    %2498 = vmatpush2.msra.mxu0 0.0
    %2499 = vmatprep.subr.mxu0 0.0
    %2500 = vmatpush2.msra.mxu0 0.0
    %2501 = vmatprep.subr.mxu0 0.0
    %2502 = vmatpush2.msra.mxu0 0.0
    %2503 = vmatprep.subr.mxu0 0.0
    %2504 = vmatpush2.msra.mxu0 0.0
    %2505 = vmatprep.subr.mxu0 0.0
    %2506 = vmatpush2.msra.mxu0 0.0
    %2507 = vmatprep.subr.mxu0 0.0
    %2508 = vmatpush2.msra.mxu0 0.0
    %2509 = vmatprep.subr.mxu0 0.0
    %2510 = vmatpush2.msra.mxu0 0.0
    %2511 = vmatprep.subr.mxu0 0.0
    %2512 = vmatpush2.msra.mxu0 0.0
    %2513 = vmatprep.subr.mxu0 0.0
    %2514 = vmatpush2.msra.mxu0 0.0
    %2515 = vmatprep.subr.mxu0 0.0
    %2516 = vmatpush2.msra.mxu0 0.0
    %2517 = vmatprep.subr.mxu0 0.0
    %2518 = vmatpush2.msra.mxu0 0.0
    %2519 = vmatprep.subr.mxu0 0.0
    %2520 = vmatpush2.msra.mxu0 0.0
    %2521 = vmatprep.mubr.f32.mxu0 0.0
    %2522 = vmatmul.mubr.f32.gmra.mxu0 %v2455
    %v2523 = vpop.f32.mrf.mxu0
    %v2524 = vadd.f32 0.0, %v2523
    %v2525 = vpop.f32.mrf.mxu0
    %2526 = vdwg.mxu0
    %v2528 = vsel %vm690, %v2005, 0
    %2530 = vmatprep.subr.mxu0 0.0
    %2531 = vmatpush1.msra.mxu0 0.0
    %2532 = vmatprep.subr.mxu0 0.0
    %2533 = vmatpush1.msra.mxu0 0.0
    %2534 = vmatprep.subr.mxu0 0.0
    %2535 = vmatpush1.msra.mxu0 0.0
    %2536 = vmatprep.subr.mxu0 0.0
    %2537 = vmatpush1.msra.mxu0 0.0
    %2538 = vmatprep.subr.mxu0 0.0
    %2539 = vmatpush1.msra.mxu0 0.0
    %2540 = vmatprep.subr.mxu0 0.0
    %2541 = vmatpush1.msra.mxu0 0.0
    %2542 = vmatprep.subr.mxu0 0.0
    %2543 = vmatpush1.msra.mxu0 0.0
    %2544 = vmatprep.subr.mxu0 0.0
    %2545 = vmatpush1.msra.mxu0 0.0
    %2546 = vmatprep.subr.mxu0 0.0
    %2547 = vmatpush1.msra.mxu0 0.0
    %2548 = vmatprep.subr.mxu0 0.0
    %2549 = vmatpush1.msra.mxu0 0.0
    %2550 = vmatprep.subr.mxu0 0.0
    %2551 = vmatpush1.msra.mxu0 0.0
    %2552 = vmatprep.subr.mxu0 0.0
    %2553 = vmatpush1.msra.mxu0 0.0
    %2554 = vmatprep.subr.mxu0 0.0
    %2555 = vmatpush1.msra.mxu0 0.0
    %2556 = vmatprep.subr.mxu0 0.0
    %2557 = vmatpush1.msra.mxu0 0.0
    %2558 = vmatprep.subr.mxu0 0.0
    %2559 = vmatpush1.msra.mxu0 0.0
    %2560 = vmatprep.subr.mxu0 0.0
    %2561 = vmatpush1.msra.mxu0 %v2015
    %2562 = vmatprep.subr.mxu0 0.0
    %2563 = vmatpush2.msra.mxu0 0.0
    %2564 = vmatprep.subr.mxu0 0.0
    %2565 = vmatpush2.msra.mxu0 0.0
    %2566 = vmatprep.subr.mxu0 0.0
    %2567 = vmatpush2.msra.mxu0 0.0
    %2568 = vmatprep.subr.mxu0 0.0
    %2569 = vmatpush2.msra.mxu0 0.0
    %2570 = vmatprep.subr.mxu0 0.0
    %2571 = vmatpush2.msra.mxu0 0.0
    %2572 = vmatprep.subr.mxu0 0.0
    %2573 = vmatpush2.msra.mxu0 0.0
    %2574 = vmatprep.subr.mxu0 0.0
    %2575 = vmatpush2.msra.mxu0 0.0
    %2576 = vmatprep.subr.mxu0 0.0
    %2577 = vmatpush2.msra.mxu0 0.0
    %2578 = vmatprep.subr.mxu0 0.0
    %2579 = vmatpush2.msra.mxu0 0.0
    %2580 = vmatprep.subr.mxu0 0.0
    %2581 = vmatpush2.msra.mxu0 0.0
    %2582 = vmatprep.subr.mxu0 0.0
    %2583 = vmatpush2.msra.mxu0 0.0
    %2584 = vmatprep.subr.mxu0 0.0
    %2585 = vmatpush2.msra.mxu0 0.0
    %2586 = vmatprep.subr.mxu0 0.0
    %2587 = vmatpush2.msra.mxu0 0.0
    %2588 = vmatprep.subr.mxu0 0.0
    %2589 = vmatpush2.msra.mxu0 0.0
    %2590 = vmatprep.subr.mxu0 0.0
    %2591 = vmatpush2.msra.mxu0 0.0
    %2592 = vmatprep.subr.mxu0 0.0
    %2593 = vmatpush2.msra.mxu0 0.0
    %2594 = vmatprep.mubr.f32.mxu0 0.0
    %2595 = vmatmul.mubr.f32.gmra.mxu0 %v2528
    %v2596 = vpop.f32.mrf.mxu0
    %v2597 = vadd.f32 0.0, %v2596
    %v2598 = vpop.f32.mrf.mxu0
    %2599 = vdwg.mxu0
    %v2600 = vadd.f32 %v2086, %v2159
    %v2601 = vadd.f32 %v2378, %v2451
    %v2602 = vadd.f32 %v2600, %v2232
    %v2603 = vadd.f32 %v2601, %v2524
    %v2604 = vadd.f32 %v2602, %v2305
    %v2605 = vadd.f32 %v2603, %v2597
    %v2606 = vld [vmem:[%s7] sm:$0x3f]
    %v2607 = vadd.f32 %v30, %v2604
    %v2608 = vadd.f32 %v31, %v2605
    %v2609 = vlaneseq
    %v2610 = vshrl.u32 %v2609, 7
    %v2611 = vsub.s32 0, %v2610
    %v2612 = vrot.slane %v2606, %v2611
    %v2613 = vadd.f32 %v2607, %v2612
    %v2614 = vadd.f32 %v2608, %v2612
    %v2615 = vsel %vm120, %v2613, 0.0
    %2616 = vadd.xlane.f32.xlu0 %v2615
    %v2617 = vpop.xlane.xlu0 %2616
    %v2618 = vsel %vm120, %v2614, 0.0
    %2619 = vadd.xlane.f32.xlu0 %v2618
    %v2620 = vpop.xlane.xlu0 %2619
    %v2621 = vrcp.pop 32.0
    %v2622 = vmul.f32 %v2617, %v2621
    %v2623 = vmul.f32 %v2620, %v2621
    %v2624 = vsub.f32 %v2613, %v2622
    %v2625 = vsub.f32 %v2614, %v2623
    %v2626 = vmul.f32 %v2624, %v2624
    %v2627 = vmul.f32 %v2625, %v2625
    %v2628 = vsel %vm120, %v2626, 0.0
    %2629 = vadd.xlane.f32.xlu0 %v2628
    %v2630 = vpop.xlane.xlu0 %2629
    %v2631 = vsel %vm120, %v2627, 0.0
    %2632 = vadd.xlane.f32.xlu0 %v2631
    %v2633 = vpop.xlane.xlu0 %2632
    %v2634 = vmul.f32 %v2630, %v2621
    %v2635 = vmul.f32 %v2633, %v2621
    %v2636 = vadd.f32 %v2634, 1e-05
    %v2637 = vadd.f32 %v2635, 1e-05
    %v2638 = vrsqrt.pop %v2636
    %v2639 = vrsqrt.pop %v2637
    %v2640 = vmul.f32 %v2624, %v2638
    %v2641 = vmul.f32 %v2625, %v2639
    %v2642 = vlaneseq
    %v2643 = vshrl.u32 %v2642, 7
    %v2644 = vsub.s32 2, %v2643
    %v2645 = vrot.slane %v2606, %v2644
    %v2646 = vmul.f32 %v2640, %v2645
    %v2647 = vmul.f32 %v2641, %v2645
    %v2648 = vlaneseq
    %v2649 = vshrl.u32 %v2648, 7
    %v2650 = vsub.s32 3, %v2649
    %v2651 = vrot.slane %v2606, %v2650
    %v2652 = vadd.f32 %v2646, %v2651
    %v2653 = vadd.f32 %v2647, %v2651
    %v2654 = vld [vmem:[%s4] sm:$0xff]
    %v2655 = vld [vmem:[%s4 + $0x8] sm:$0xff]
    %v2656 = vld [vmem:[%s4 + $0x10] sm:$0xff]
    %v2657 = vld [vmem:[%s4 + $0x18] sm:$0xff]
    %v2658 = vld [vmem:[%s5] sm:$0x1]
    %v2660 = vlaneseq
    %v2661 = vshrl.u32 %v2660, 7
    %v2662 = vsub.s32 0, %v2661
    %v2663 = vrot.slane %v2658, %v2662
    %v2666 = vsel %vm120, %v2652, 0
    %v2669 = vsel %vm120, %v2653, 0
    %2671 = vmatprep.subr.mxu0 0.0
    %2672 = vmatpush1.msra.mxu0 0.0
    %2673 = vmatprep.subr.mxu0 0.0
    %2674 = vmatpush1.msra.mxu0 0.0
    %2675 = vmatprep.subr.mxu0 0.0
    %2676 = vmatpush1.msra.mxu0 0.0
    %2677 = vmatprep.subr.mxu0 0.0
    %2678 = vmatpush1.msra.mxu0 0.0
    %2679 = vmatprep.subr.mxu0 0.0
    %2680 = vmatpush1.msra.mxu0 0.0
    %2681 = vmatprep.subr.mxu0 0.0
    %2682 = vmatpush1.msra.mxu0 0.0
    %2683 = vmatprep.subr.mxu0 0.0
    %2684 = vmatpush1.msra.mxu0 0.0
    %2685 = vmatprep.subr.mxu0 0.0
    %2686 = vmatpush1.msra.mxu0 0.0
    %2687 = vmatprep.subr.mxu0 0.0
    %2688 = vmatpush1.msra.mxu0 0.0
    %2689 = vmatprep.subr.mxu0 0.0
    %2690 = vmatpush1.msra.mxu0 0.0
    %2691 = vmatprep.subr.mxu0 0.0
    %2692 = vmatpush1.msra.mxu0 0.0
    %2693 = vmatprep.subr.mxu0 0.0
    %2694 = vmatpush1.msra.mxu0 0.0
    %2695 = vmatprep.subr.mxu0 0.0
    %2696 = vmatpush1.msra.mxu0 %v2657
    %2697 = vmatprep.subr.mxu0 0.0
    %2698 = vmatpush1.msra.mxu0 %v2656
    %2699 = vmatprep.subr.mxu0 0.0
    %2700 = vmatpush1.msra.mxu0 %v2655
    %2701 = vmatprep.subr.mxu0 0.0
    %2702 = vmatpush1.msra.mxu0 %v2654
    %2703 = vmatprep.subr.mxu0 0.0
    %2704 = vmatpush2.msra.mxu0 0.0
    %2705 = vmatprep.subr.mxu0 0.0
    %2706 = vmatpush2.msra.mxu0 0.0
    %2707 = vmatprep.subr.mxu0 0.0
    %2708 = vmatpush2.msra.mxu0 0.0
    %2709 = vmatprep.subr.mxu0 0.0
    %2710 = vmatpush2.msra.mxu0 0.0
    %2711 = vmatprep.subr.mxu0 0.0
    %2712 = vmatpush2.msra.mxu0 0.0
    %2713 = vmatprep.subr.mxu0 0.0
    %2714 = vmatpush2.msra.mxu0 0.0
    %2715 = vmatprep.subr.mxu0 0.0
    %2716 = vmatpush2.msra.mxu0 0.0
    %2717 = vmatprep.subr.mxu0 0.0
    %2718 = vmatpush2.msra.mxu0 0.0
    %2719 = vmatprep.subr.mxu0 0.0
    %2720 = vmatpush2.msra.mxu0 0.0
    %2721 = vmatprep.subr.mxu0 0.0
    %2722 = vmatpush2.msra.mxu0 0.0
    %2723 = vmatprep.subr.mxu0 0.0
    %2724 = vmatpush2.msra.mxu0 0.0
    %2725 = vmatprep.subr.mxu0 0.0
    %2726 = vmatpush2.msra.mxu0 0.0
    %2727 = vmatprep.subr.mxu0 0.0
    %2728 = vmatpush2.msra.mxu0 0.0
    %2729 = vmatprep.subr.mxu0 0.0
    %2730 = vmatpush2.msra.mxu0 0.0
    %2731 = vmatprep.subr.mxu0 0.0
    %2732 = vmatpush2.msra.mxu0 0.0
    %2733 = vmatprep.subr.mxu0 0.0
    %2734 = vmatpush2.msra.mxu0 0.0
    %2735 = vmatprep.mubr.f32.mxu0 0.0
    %2736 = vmatmul.mubr.f32.gmra.mxu0 %v2666
    %v2737 = vpop.f32.mrf.mxu0
    %v2738 = vadd.f32 %v2663, %v2737
    %v2739 = vpop.f32.mrf.mxu0
    %2740 = vmatprep.mubr.f32.mxu0 0.0
    %2741 = vmatmul.mubr.f32.gmra.mxu0 %v2669
    %v2742 = vpop.f32.mrf.mxu0
    %v2743 = vadd.f32 %v2663, %v2742
    %v2744 = vpop.f32.mrf.mxu0
    %2745 = vdwg.mxu0
    %v2746 = vmax.f32 %v2738, 0.0
    %v2747 = vmax.f32 %v2743, 0.0
    %v2748 = vld [vmem:[%s6] sm:$0xff]
    %v2749 = vld [vmem:[%s6 + $0x8] sm:$0xff]
    %v2750 = vld [vmem:[%s6 + $0x10] sm:$0xff]
    %v2751 = vld [vmem:[%s6 + $0x18] sm:$0xff]
    %v2752 = vld [vmem:[%s6 + $0x20] sm:$0xff]
    %v2753 = vld [vmem:[%s6 + $0x28] sm:$0xff]
    %v2754 = vld [vmem:[%s6 + $0x30] sm:$0xff]
    %v2755 = vld [vmem:[%s6 + $0x38] sm:$0xff]
    %v2756 = vld [vmem:[%s6 + $0x40] sm:$0xff]
    %v2757 = vld [vmem:[%s6 + $0x48] sm:$0xff]
    %v2758 = vld [vmem:[%s6 + $0x50] sm:$0xff]
    %v2759 = vld [vmem:[%s6 + $0x58] sm:$0xff]
    %v2760 = vld [vmem:[%s6 + $0x60] sm:$0xff]
    %v2761 = vld [vmem:[%s6 + $0x68] sm:$0xff]
    %v2762 = vld [vmem:[%s6 + $0x70] sm:$0xff]
    %v2763 = vld [vmem:[%s6 + $0x78] sm:$0xff]
    %v2764 = vlaneseq
    %v2765 = vshrl.u32 %v2764, 7
    %v2766 = vsub.s32 1, %v2765
    %v2767 = vrot.slane %v2606, %v2766
    %2768 = vmatprep.subr.mxu0 0.0
    %2769 = vmatpush1.msra.mxu0 %v2763
    %2770 = vmatprep.subr.mxu0 0.0
    %2771 = vmatpush1.msra.mxu0 %v2762
    %2772 = vmatprep.subr.mxu0 0.0
    %2773 = vmatpush1.msra.mxu0 %v2761
    %2774 = vmatprep.subr.mxu0 0.0
    %2775 = vmatpush1.msra.mxu0 %v2760
    %2776 = vmatprep.subr.mxu0 0.0
    %2777 = vmatpush1.msra.mxu0 %v2759
    %2778 = vmatprep.subr.mxu0 0.0
    %2779 = vmatpush1.msra.mxu0 %v2758
    %2780 = vmatprep.subr.mxu0 0.0
    %2781 = vmatpush1.msra.mxu0 %v2757
    %2782 = vmatprep.subr.mxu0 0.0
    %2783 = vmatpush1.msra.mxu0 %v2756
    %2784 = vmatprep.subr.mxu0 0.0
    %2785 = vmatpush1.msra.mxu0 %v2755
    %2786 = vmatprep.subr.mxu0 0.0
    %2787 = vmatpush1.msra.mxu0 %v2754
    %2788 = vmatprep.subr.mxu0 0.0
    %2789 = vmatpush1.msra.mxu0 %v2753
    %2790 = vmatprep.subr.mxu0 0.0
    %2791 = vmatpush1.msra.mxu0 %v2752
    %2792 = vmatprep.subr.mxu0 0.0
    %2793 = vmatpush1.msra.mxu0 %v2751
    %2794 = vmatprep.subr.mxu0 0.0
    %2795 = vmatpush1.msra.mxu0 %v2750
    %2796 = vmatprep.subr.mxu0 0.0
    %2797 = vmatpush1.msra.mxu0 %v2749
    %2798 = vmatprep.subr.mxu0 0.0
    %2799 = vmatpush1.msra.mxu0 %v2748
    %2800 = vmatprep.subr.mxu0 0.0
    %2801 = vmatpush2.msra.mxu0 0.0
    %2802 = vmatprep.subr.mxu0 0.0
    %2803 = vmatpush2.msra.mxu0 0.0
    %2804 = vmatprep.subr.mxu0 0.0
    %2805 = vmatpush2.msra.mxu0 0.0
    %2806 = vmatprep.subr.mxu0 0.0
    %2807 = vmatpush2.msra.mxu0 0.0
    %2808 = vmatprep.subr.mxu0 0.0
    %2809 = vmatpush2.msra.mxu0 0.0
    %2810 = vmatprep.subr.mxu0 0.0
    %2811 = vmatpush2.msra.mxu0 0.0
    %2812 = vmatprep.subr.mxu0 0.0
    %2813 = vmatpush2.msra.mxu0 0.0
    %2814 = vmatprep.subr.mxu0 0.0
    %2815 = vmatpush2.msra.mxu0 0.0
    %2816 = vmatprep.subr.mxu0 0.0
    %2817 = vmatpush2.msra.mxu0 0.0
    %2818 = vmatprep.subr.mxu0 0.0
    %2819 = vmatpush2.msra.mxu0 0.0
    %2820 = vmatprep.subr.mxu0 0.0
    %2821 = vmatpush2.msra.mxu0 0.0
    %2822 = vmatprep.subr.mxu0 0.0
    %2823 = vmatpush2.msra.mxu0 0.0
    %2824 = vmatprep.subr.mxu0 0.0
    %2825 = vmatpush2.msra.mxu0 0.0
    %2826 = vmatprep.subr.mxu0 0.0
    %2827 = vmatpush2.msra.mxu0 0.0
    %2828 = vmatprep.subr.mxu0 0.0
    %2829 = vmatpush2.msra.mxu0 0.0
    %2830 = vmatprep.subr.mxu0 0.0
    %2831 = vmatpush2.msra.mxu0 0.0
    %2832 = vmatprep.mubr.f32.mxu0 0.0
    %2833 = vmatmul.mubr.f32.gmra.mxu0 %v2746
    %v2834 = vpop.f32.mrf.mxu0
    %v2835 = vadd.f32 %v2767, %v2834
    %v2836 = vpop.f32.mrf.mxu0
    %2837 = vmatprep.mubr.f32.mxu0 0.0
    %2838 = vmatmul.mubr.f32.gmra.mxu0 %v2747
    %v2839 = vpop.f32.mrf.mxu0
    %v2840 = vadd.f32 %v2767, %v2839
    %v2841 = vpop.f32.mrf.mxu0
    %2842 = vdwg.mxu0
    %v2843 = vadd.f32 %v2652, %v2835
    %v2844 = vadd.f32 %v2653, %v2840
    %v2845 = vsel %vm120, %v2843, 0.0
    %2846 = vadd.xlane.f32.xlu0 %v2845
    %v2847 = vpop.xlane.xlu0 %2846
    %v2848 = vsel %vm120, %v2844, 0.0
    %2849 = vadd.xlane.f32.xlu0 %v2848
    %v2850 = vpop.xlane.xlu0 %2849
    %v2851 = vmul.f32 %v2847, %v2621
    %v2852 = vmul.f32 %v2850, %v2621
    %v2853 = vsub.f32 %v2843, %v2851
    %v2854 = vsub.f32 %v2844, %v2852
    %v2855 = vmul.f32 %v2853, %v2853
    %v2856 = vmul.f32 %v2854, %v2854
    %v2857 = vsel %vm120, %v2855, 0.0
    %2858 = vadd.xlane.f32.xlu0 %v2857
    %v2859 = vpop.xlane.xlu0 %2858
    %v2860 = vsel %vm120, %v2856, 0.0
    %2861 = vadd.xlane.f32.xlu0 %v2860
    %v2862 = vpop.xlane.xlu0 %2861
    %v2863 = vmul.f32 %v2859, %v2621
    %v2864 = vmul.f32 %v2862, %v2621
    %v2865 = vadd.f32 %v2863, 1e-05
    %v2866 = vadd.f32 %v2864, 1e-05
    %v2867 = vrsqrt.pop %v2865
    %v2868 = vrsqrt.pop %v2866
    %v2869 = vmul.f32 %v2853, %v2867
    %v2870 = vmul.f32 %v2854, %v2868
    %v2871 = vlaneseq
    %v2872 = vshrl.u32 %v2871, 7
    %v2873 = vsub.s32 4, %v2872
    %v2874 = vrot.slane %v2606, %v2873
    %v2875 = vmul.f32 %v2869, %v2874
    %v2876 = vmul.f32 %v2870, %v2874
    %v2877 = vlaneseq
    %v2878 = vshrl.u32 %v2877, 7
    %v2879 = vsub.s32 5, %v2878
    %v2880 = vrot.slane %v2606, %v2879
    %v2881 = vadd.f32 %v2875, %v2880
    %v2882 = vadd.f32 %v2876, %v2880
    %2883 = vst.msk [vmem:[#allocation2] sm:$0xff] %vm120, %v2881
    %2884 = vst.msk [vmem:[#allocation2 + $0x8] sm:$0xff] %vm120, %v2882
    // Predicated region
    $region34: #{transformer_encoder_layer.1} parent=1 // pred_check
      _
    $region35: #{transformer_encoder_layer.1} parent=1 // pred_check_branch
      %2886 = sbr.rel (0) target = $region37
    $region36: #{transformer_encoder_layer.1} parent=1 // pred_region
      %s2888 = ssub.s32 256, 256
      %2889 = vsyncadd [#allocation3], %s2888
      %s2890 = sshll.u32 [#allocation2], 4
      %s2891 = int_to_ptr.vmem [resolvable:$true] %s2890
      %2896 = dma.vmem_to_hbm [thread:$0]  %s2891, 256, %s8, [#allocation3], 128, 128, 8
    $region37: #{transformer_encoder_layer.1} parent=1 // pred_fallthru
      _
    // Predicated region
    $region38: #{transformer_encoder_layer.1} parent=1 // pred_check
      _
    $region39: #{transformer_encoder_layer.1} parent=1 // pred_check_branch
      %2898 = sbr.rel (0) target = $region41
    $region40: #{transformer_encoder_layer.1} parent=1 // pred_region
      %2899 = dma.done [#allocation3], 256
    $region41: #{transformer_encoder_layer.1} parent=1 // pred_fallthru
      _
    %2900 = vsyncpa [#allocation3], 1

</llo_original>
